<compile_context>
chip_gen: v7x
topology: tpu7x:2x2x1
jax: 0.10.0
libtpu: 0.0.40
codegen_flags: <defaults>
</compile_context>

<pallas_src>
import functools
import numpy as np
import jax
import jax.numpy as jnp
from jax import lax
from jax.experimental import pallas as pl
from jax.experimental.pallas import tpu as pltpu

F32 = jnp.float32
BF16 = jnp.bfloat16


# ------------------------------ shared helpers ------------------------------
def _mm(a, b):
    """MXU matmul: bf16 operands, f32 accumulation."""
    return jnp.dot(a.astype(BF16), b.astype(BF16), preferred_element_type=F32)


def _layernorm(x, g, b, eps=1e-5):
    mu = jnp.mean(x, axis=-1, keepdims=True)
    var = jnp.mean((x - mu) ** 2, axis=-1, keepdims=True)
    return (x - mu) * lax.rsqrt(var + eps) * g + b


# ---------------- kernel 1: image branch + text h1 + 2-layer LSTM -----------
def _enc_lstm_kernel(img_ref, x_ref,
                     imgw_ref, imgb_ref, tw1_ref, tb1_ref,
                     wih0_ref, b0_ref, whh0_ref, w1s_ref, b1_ref,
                     hls_ref, imf2_ref, xg_scr, *, L, H):
    # image branch: tanh(LinearDropConnect) then max over image tokens
    imf = jnp.tanh(_mm(img_ref[...], imgw_ref[...]) + imgb_ref[...])   # (Limg, 2H)
    imf = jnp.max(imf, axis=0, keepdims=True)                          # (1, 2H)
    imf1 = imf[:, :H]                 # initial h AND c of both LSTM layers
    imf2_ref[...] = imf[:, H:]        # query vector for the cross transformer

    # text h1 + hoisted LSTM layer-0 input gates (computed off the serial path)
    h1 = _mm(x_ref[...], tw1_ref[...]) + tb1_ref[...]                  # (L, H)
    xg_scr[...] = _mm(h1, wih0_ref[...]) + b0_ref[...]                 # (L, 4H)

    whh0 = whh0_ref[...]
    w1s = w1s_ref[...]
    b1v = b1_ref[...]

    def gates(g, c):
        i = jax.nn.sigmoid(g[:, 0 * H:1 * H])
        f = jax.nn.sigmoid(g[:, 1 * H:2 * H])
        gg = jnp.tanh(g[:, 2 * H:3 * H])
        o = jax.nn.sigmoid(g[:, 3 * H:4 * H])
        c_new = f * c + i * gg
        return o * jnp.tanh(c_new), c_new

    def step(t, carry):
        h0, c0, h1s, c1s = carry
        g0 = xg_scr[pl.ds(t, 1), :] + _mm(h0, whh0)
        h0n, c0n = gates(g0, c0)
        # layer 1: one fused 2H-deep contraction instead of two H-deep dots
        g1 = _mm(jnp.concatenate([h0n, h1s], axis=-1), w1s) + b1v
        h1n, c1n = gates(g1, c1s)
        hls_ref[pl.ds(t, 1), :] = h1n
        return (h0n, c0n, h1n, c1n)

    lax.fori_loop(0, L, step, (imf1, imf1, imf1, imf1), unroll=min(L, 8))


# -------- kernel 2: self-transformer + cross-transformer + NER scorer -------
def _attn_ner_kernel(x_ref, hls_ref, imf2_ref, mrow_ref, mcol_ref,
                     tw2_ref, tb2_ref,
                     s_wq, s_bq, s_wkv, s_bkv, s_wf, s_bf,
                     s_l1g, s_l1b, s_f1w, s_f1b, s_f2w, s_f2b, s_l2g, s_l2b,
                     c_wq, c_bq, c_wkv, c_bkv, c_wf, c_bf,
                     c_l1g, c_l1b, c_f1w, c_f1b, c_f2w, c_f2b, c_l2g, c_l2b,
                     wn1, wn2, bn, wst, wen, whg, bhid, lng, lnb, wtag, btag,
                     o_ref, *, L, H, nh, sim):
    scale = 1.0 / float(np.sqrt(H))

    def softmax(s):  # f32 stats; divide goes to the EUP via approx reciprocal
        s = s - jnp.max(s, axis=-1, keepdims=True)
        p = jnp.exp(s)
        return p * pl.reciprocal(jnp.sum(p, axis=-1, keepdims=True), approx=True)

    def attention(q_in, kv_in, wq, bq, wkv, bkv, wf, bf):
        # Per-batch attention (grid axis = batch): no cross-batch masking needed.
        Q = _mm(q_in, wq[...]) + bq[...]                     # (Lq, nh*H)
        KV = _mm(kv_in, wkv[...]) + bkv[...]                 # (L, 2*nh*H)
        K, V = KV[:, :nh * H], KV[:, nh * H:]
        ctx = []
        for h in range(nh):
            qh = Q[:, h * H:(h + 1) * H]
            kh = K[:, h * H:(h + 1) * H]
            vh = V[:, h * H:(h + 1) * H]
            s = lax.dot_general(qh.astype(BF16), kh.astype(BF16),
                                (((1,), (1,)), ((), ())),
                                preferred_element_type=F32) * scale
            ctx.append(_mm(softmax(s), vh))
        # single deep (nh*H) contraction for the output projection
        return _mm(jnp.concatenate(ctx, axis=-1), wf[...]) + bf[...]

    def transformer(q_in, kv_in, prm, sim_val):
        (wq, bq, wkv, bkv, wf, bf, l1g, l1b, f1w, f1b, f2w, f2b, l2g, l2b) = prm
        attn = attention(q_in, kv_in, wq, bq, wkv, bkv, wf, bf)
        res = kv_in + attn if sim_val is None else kv_in + sim_val * attn
        z = _layernorm(res, l1g[...], l1b[...])
        ff = _mm(jnp.maximum(_mm(z, f1w[...]) + f1b[...], 0.0), f2w[...]) + f2b[...]
        return _layernorm(z + ff, l2g[...], l2b[...])

    hls = hls_ref[...]                                       # (L, H)
    h2 = _mm(x_ref[...], tw2_ref[...]) + tb2_ref[...]        # (L, H)

    self_prm = (s_wq, s_bq, s_wkv, s_bkv, s_wf, s_bf,
                s_l1g, s_l1b, s_f1w, s_f1b, s_f2w, s_f2b, s_l2g, s_l2b)
    cross_prm = (c_wq, c_bq, c_wkv, c_bkv, c_wf, c_bf,
                 c_l1g, c_l1b, c_f1w, c_f1b, c_f2w, c_f2b, c_l2g, c_l2b)

    self_out = transformer(hls, h2, self_prm, None)          # (L, H)
    # cross layer: query is one per-batch vector (imf_2 repeated over L in
    # PyTorch) -> compute a single query row and broadcast in the residual.
    h_ner2 = transformer(imf2_ref[...], self_out, cross_prm, sim)   # (L, H)

    # ---------------- ner_unit span scorer ----------------
    hg = jnp.tanh(_mm(hls, wn1[...]) + _mm(h_ner2, wn2[...]) + bn[...])
    hg = jnp.max(hg, axis=0, keepdims=True)                  # (1, H) h_global
    a = _mm(h_ner2, wst[...])                                # (L, H) start
    e = _mm(h_ner2, wen[...])                                # (L, H) end
    g = _mm(hg, whg[...]) + bhid[...]                        # (1, H) global
    pre = a[:, None, :] + e[None, :, :] + g[None, :, :]      # (L, L, H)
    z = _layernorm(pre, lng[...], lnb[...])
    z = jnp.where(z > 0, z, jnp.exp(jnp.minimum(z, 0.0)) - 1.0)   # ELU(alpha=1)
    Tp = wtag.shape[-1]                                      # tag dim padded to 128
    logits = _mm(z.reshape(L * L, H), wtag[...]) + btag[...]
    ner = jax.nn.sigmoid(logits).reshape(L, L, Tp)

    ii = lax.broadcasted_iota(jnp.int32, (L, L), 0)
    jj = lax.broadcasted_iota(jnp.int32, (L, L), 1)
    fm = (jj >= ii).astype(F32) * mcol_ref[...] * mrow_ref[...]   # (L,L)*(L,1)*(1,L)
    o_ref[...] = (ner * fm[:, :, None]).reshape(L * L, Tp)   # lane-dense (L*L, 128)


# ------------------------------ model forward -------------------------------
def mcner_forward(text_feat, img_feat, sim_score, mask, params,
                  *, dropconnect=0.1, nh=12):
    B, L, D = text_feat.shape
    H = params["hidden"]

    # one-off parameter packing: eval DropConnect scaling, bf16 MXU weights,
    # stacked LSTM layer-1 weights, K|V concat, tag-dim padding to 128 lanes.
    img_w = (params["img_w"] * (1.0 - dropconnect)).astype(BF16)
    txt_w = params["txt_w"] * (1.0 - dropconnect)
    txt_w1 = txt_w[:, :H].astype(BF16)
    txt_w2 = txt_w[:, H:].astype(BF16)
    txt_b1 = params["txt_b"][:, :H]
    txt_b2 = params["txt_b"][:, H:]
    lstm = params["lstm"]
    wih0 = lstm["wih0"].astype(BF16)
    whh0 = lstm["whh0"].astype(BF16)
    w1s = jnp.concatenate([lstm["wih1"], lstm["whh1"]], axis=0).astype(BF16)

    def pack_trans(p):
        return (p["wq"].astype(BF16), p["bq"],
                jnp.concatenate([p["wk"], p["wv"]], axis=1).astype(BF16),
                jnp.concatenate([p["bk"], p["bv"]], axis=1),
                p["wf"].astype(BF16), p["bf"],
                p["ln1_g"], p["ln1_b"],
                p["ffw1"].astype(BF16), p["ffb1"],
                p["ffw2"].astype(BF16), p["ffb2"],
                p["ln2_g"], p["ln2_b"])

    self_w = pack_trans(params["selftrans"])
    cross_w = pack_trans(params["crosstrans"])

    nerp = params["ner"]
    T = nerp["wtag"].shape[1]
    Tp = ((T + 127) // 128) * 128
    wtag_p = jnp.zeros((H, Tp), F32).at[:, :T].set(nerp["wtag"]).astype(BF16)
    btag_p = jnp.zeros((1, Tp), F32).at[:, :T].set(nerp["btag"])
    ner_w = (nerp["wn1"].astype(BF16), nerp["wn2"].astype(BF16), nerp["bn"],
             nerp["wst"].astype(BF16), nerp["wen"].astype(BF16),
             nerp["whg"].astype(BF16), nerp["bhid"],
             nerp["lng"], nerp["lnb"], wtag_p, btag_p)

    # block-spec helpers: grid=(B,) "parallel" (both v7x TensorCores usable);
    # per-batch data blocks squeeze the batch dim, weights are replicated.
    def dspec(shape):
        nd = len(shape)
        return pl.BlockSpec((None,) + tuple(shape[1:]),
                            lambda b, _n=nd: (b,) + (0,) * (_n - 1))

    def wspec(arr):
        nd = arr.ndim
        return pl.BlockSpec(arr.shape, lambda b, _n=nd: (0,) * _n)

    cparams = pltpu.CompilerParams(
        dimension_semantics=("parallel",),
        vmem_limit_bytes=32 * 1024 * 1024)  # explicit scoped VMEM (tiny usage here)

    # --- kernel 1: image branch + text h1 + hoisted gates + 2-layer LSTM ----
    lstm_ops = (img_w, params["img_b"], txt_w1, txt_b1, wih0, lstm["b0"],
                whh0, w1s, lstm["b1"])
    hls, imf2 = pl.pallas_call(
        functools.partial(_enc_lstm_kernel, L=L, H=H),
        grid=(B,),
        in_specs=[dspec(img_feat.shape), dspec(text_feat.shape)]
                 + [wspec(w) for w in lstm_ops],
        out_specs=(pl.BlockSpec((None, L, H), lambda b: (b, 0, 0)),
                   pl.BlockSpec((None, 1, H), lambda b: (b, 0, 0))),
        out_shape=(jax.ShapeDtypeStruct((B, L, H), F32),
                   jax.ShapeDtypeStruct((B, 1, H), F32)),
        scratch_shapes=[pltpu.VMEM((L, 4 * H), F32)],
        compiler_params=cparams,
    )(img_feat, text_feat, *lstm_ops)

    # --- kernel 2: self-transformer + cross-transformer + NER span scorer ---
    mask_b = jnp.transpose(mask, (1, 0))        # (B, L)
    mrow = mask_b[:, None, :]                   # (B, 1, L) end-token mask
    mcol = mask_b[:, :, None]                   # (B, L, 1) start-token mask
    data_ins = (text_feat, hls, imf2, mrow, mcol)
    weight_ins = (txt_w2, txt_b2) + self_w + cross_w + ner_w

    ner_flat = pl.pallas_call(
        functools.partial(_attn_ner_kernel, L=L, H=H, nh=nh,
                          sim=float(sim_score)),
        grid=(B,),
        in_specs=[dspec(a.shape) for a in data_ins]
                 + [wspec(a) for a in weight_ins],
        out_specs=pl.BlockSpec((None, L * L, Tp), lambda b: (b, 0, 0)),
        out_shape=jax.ShapeDtypeStruct((B, L * L, Tp), F32),
        compiler_params=cparams,
    )(*data_ins, *weight_ins)

    ner4 = ner_flat.reshape(B, L, L, Tp)[..., :T]
    ner_score = jnp.transpose(ner4, (1, 2, 0, 3))   # (L, L, B, T) as in PyTorch
    return ner_score, None


# ----------------------------- parameter init -------------------------------
def _dense(key, fan_in, fan_out, scale=0.05):
    k1, k2 = jax.random.split(key)
    return (jax.random.normal(k1, (fan_in, fan_out), F32) * scale,
            jax.random.normal(k2, (1, fan_out), F32) * scale)


def init_transformer_params(key, H, nh):
    ks = jax.random.split(key, 6)
    p = {}
    p["wq"], p["bq"] = _dense(ks[0], H, nh * H)
    p["wk"], p["bk"] = _dense(ks[1], H, nh * H)
    p["wv"], p["bv"] = _dense(ks[2], H, nh * H)
    p["wf"], p["bf"] = _dense(ks[3], nh * H, H)
    p["ffw1"], p["ffb1"] = _dense(ks[4], H, H)
    p["ffw2"], p["ffb2"] = _dense(ks[5], H, H)
    p["ln1_g"] = jnp.ones((1, H), F32); p["ln1_b"] = jnp.zeros((1, H), F32)
    p["ln2_g"] = jnp.ones((1, H), F32); p["ln2_b"] = jnp.zeros((1, H), F32)
    return p


def init_lstm_params(key, H):
    ks = jax.random.split(key, 6)
    return {"wih0": jax.random.normal(ks[0], (H, 4 * H), F32) * 0.05,
            "whh0": jax.random.normal(ks[1], (H, 4 * H), F32) * 0.05,
            "b0":   jax.random.normal(ks[2], (1, 4 * H), F32) * 0.05,
            "wih1": jax.random.normal(ks[3], (H, 4 * H), F32) * 0.05,
            "whh1": jax.random.normal(ks[4], (H, 4 * H), F32) * 0.05,
            "b1":   jax.random.normal(ks[5], (1, 4 * H), F32) * 0.05}


def init_ner_params(key, H, T):
    ks = jax.random.split(key, 3)
    wn, bn = _dense(ks[0], 2 * H, H)
    whid, bhid = _dense(ks[1], 3 * H, H)
    wtag, btag = _dense(ks[2], H, T)
    return {"wn1": wn[:H], "wn2": wn[H:], "bn": bn,
            "wst": whid[:H], "wen": whid[H:2 * H], "whg": whid[2 * H:],
            "bhid": bhid,
            "lng": jnp.ones((1, H), F32), "lnb": jnp.zeros((1, H), F32),
            "wtag": wtag, "btag": btag}


# ----------------------------------- main ------------------------------------
if __name__ == "__main__":
    B, L, Limg = 2, 8, 5
    D_IN, H, NH, T = 64, 32, 12, 7

    key = jax.random.PRNGKey(0)
    keys = jax.random.split(key, 10)
    params = {
        "hidden": H,
        "img_w": jax.random.normal(keys[0], (D_IN, 2 * H), F32) * 0.05,
        "img_b": jax.random.normal(keys[1], (1, 2 * H), F32) * 0.05,
        "txt_w": jax.random.normal(keys[2], (D_IN, 2 * H), F32) * 0.05,
        "txt_b": jax.random.normal(keys[3], (1, 2 * H), F32) * 0.05,
        "lstm": init_lstm_params(keys[4], H),
        "selftrans": init_transformer_params(keys[5], H, NH),
        "crosstrans": init_transformer_params(keys[6], H, NH),
        "ner": init_ner_params(keys[7], H, T),
    }

    text_feat = jax.random.normal(keys[8], (B, L, D_IN), F32)   # BERT output stand-in
    img_feat = jax.random.normal(keys[9], (B, Limg, D_IN), F32) # BLIP output stand-in
    mask = jnp.ones((L, B), F32).at[L - 1, 1].set(0.0)          # (seq, batch) token mask
    sim_score = 0.7

    ner_score, _ = mcner_forward(text_feat, img_feat, sim_score, mask, params, nh=NH)
    ner_score = jax.block_until_ready(ner_score)
    assert ner_score.shape == (L, L, B, T)
    assert bool(jnp.all(jnp.isfinite(ner_score)))
    print("KERNEL_OK")
</pallas_src>

<mosaic_0001>
module attributes {stable_mosaic.version = 11 : i64} {
  func.func @_enc_lstm_kernel(%arg0: i32, %arg1: memref<1x5x64xf32, #tpu.memory_space<vmem>>, %arg2: memref<1x8x64xf32, #tpu.memory_space<vmem>>, %arg3: memref<64x64xbf16, #tpu.memory_space<vmem>>, %arg4: memref<1x64xf32, #tpu.memory_space<vmem>>, %arg5: memref<64x32xbf16, #tpu.memory_space<vmem>>, %arg6: memref<1x32xf32, #tpu.memory_space<vmem>>, %arg7: memref<32x128xbf16, #tpu.memory_space<vmem>>, %arg8: memref<1x128xf32, #tpu.memory_space<vmem>>, %arg9: memref<32x128xbf16, #tpu.memory_space<vmem>>, %arg10: memref<64x128xbf16, #tpu.memory_space<vmem>>, %arg11: memref<1x128xf32, #tpu.memory_space<vmem>>, %arg12: memref<1x8x32xf32, #tpu.memory_space<vmem>>, %arg13: memref<1x1x32xf32, #tpu.memory_space<vmem>>, %arg14: memref<8x128xf32, #tpu.memory_space<vmem>>) attributes {dimension_semantics = [#tpu.dimension_semantics<parallel>], iteration_bounds = array<i64: 2>, scalar_prefetch = 0 : i64, scratch_operands = 1 : i64, tpu.core_type = #tpu.core_type<tc>, window_params = [{transform_indices = @transform_0, window_bounds = array<i64: 1, 5, 64>}, {transform_indices = @transform_1, window_bounds = array<i64: 1, 8, 64>}, {pipeline_mode = #tpu.pipeline_mode<synchronous>, transform_indices = @transform_2, window_bounds = array<i64: 64, 64>}, {pipeline_mode = #tpu.pipeline_mode<synchronous>, transform_indices = @transform_3, window_bounds = array<i64: 1, 64>}, {pipeline_mode = #tpu.pipeline_mode<synchronous>, transform_indices = @transform_4, window_bounds = array<i64: 64, 32>}, {pipeline_mode = #tpu.pipeline_mode<synchronous>, transform_indices = @transform_5, window_bounds = array<i64: 1, 32>}, {pipeline_mode = #tpu.pipeline_mode<synchronous>, transform_indices = @transform_6, window_bounds = array<i64: 32, 128>}, {pipeline_mode = #tpu.pipeline_mode<synchronous>, transform_indices = @transform_7, window_bounds = array<i64: 1, 128>}, {pipeline_mode = #tpu.pipeline_mode<synchronous>, transform_indices = @transform_8, window_bounds = array<i64: 32, 128>}, {pipeline_mode = #tpu.pipeline_mode<synchronous>, transform_indices = @transform_9, window_bounds = array<i64: 64, 128>}, {pipeline_mode = #tpu.pipeline_mode<synchronous>, transform_indices = @transform_10, window_bounds = array<i64: 1, 128>}, {transform_indices = @transform_11, window_bounds = array<i64: 1, 8, 32>}, {transform_indices = @transform_12, window_bounds = array<i64: 1, 1, 32>}]} {
    %c0 = arith.constant 0 : index
    %c0_0 = arith.constant 0 : index
    %c0_1 = arith.constant 0 : index
    %0 = vector.load %arg1[%c0, %c0_0, %c0_1] : memref<1x5x64xf32, #tpu.memory_space<vmem>>, vector<1x5x64xf32>
    %1 = vector.shape_cast %0 : vector<1x5x64xf32> to vector<5x64xf32>
    %c0_2 = arith.constant 0 : index
    %c0_3 = arith.constant 0 : index
    %2 = vector.load %arg3[%c0_2, %c0_3] : memref<64x64xbf16, #tpu.memory_space<vmem>>, vector<64x64xbf16>
    %3 = arith.truncf %1 : vector<5x64xf32> to vector<5x64xbf16>
    %cst = arith.constant dense<0.000000e+00> : vector<5x64xf32>
    %4 = tpu.matmul %3, %2, %cst {dimension_numbers = #tpu.dot_dimension_numbers<[1], [0], [0], [1], [0, 0, 1, 1], [], []>} : vector<5x64xbf16>, vector<64x64xbf16>, vector<5x64xf32> -> vector<5x64xf32>
    %c0_4 = arith.constant 0 : index
    %c0_5 = arith.constant 0 : index
    %5 = vector.load %arg4[%c0_4, %c0_5] : memref<1x64xf32, #tpu.memory_space<vmem>>, vector<1x64xf32>
    %6 = vector.broadcast %5 : vector<1x64xf32> to vector<5x64xf32>
    %7 = arith.addf %4, %6 : vector<5x64xf32>
    %8 = math.tanh %7 : vector<5x64xf32>
    %cst_6 = arith.constant dense<0xFF800000> : vector<64xf32>
    %9 = vector.multi_reduction <maximumf>, %8, %cst_6 [0] : vector<5x64xf32> to vector<64xf32>
    %10 = vector.shape_cast %9 : vector<64xf32> to vector<1x64xf32>
    %11 = vector.extract_strided_slice %10 {offsets = [0, 0], sizes = [1, 32], strides = [1, 1]} : vector<1x64xf32> to vector<1x32xf32>
    %12 = vector.extract_strided_slice %10 {offsets = [0, 32], sizes = [1, 32], strides = [1, 1]} : vector<1x64xf32> to vector<1x32xf32>
    %c0_7 = arith.constant 0 : index
    %c0_8 = arith.constant 0 : index
    %c0_9 = arith.constant 0 : index
    %13 = vector.load %arg13[%c0_7, %c0_8, %c0_9] : memref<1x1x32xf32, #tpu.memory_space<vmem>>, vector<1x1x32xf32>
    %14 = vector.shape_cast %13 : vector<1x1x32xf32> to vector<1x32xf32>
    %15 = vector.shape_cast %12 : vector<1x32xf32> to vector<1x1x32xf32>
    tpu.vector_store %arg13[%c0_7, %c0_8, %c0_9], %15 {strides = array<i32>} : memref<1x1x32xf32, #tpu.memory_space<vmem>>, vector<1x1x32xf32>,
    %c0_10 = arith.constant 0 : index
    %c0_11 = arith.constant 0 : index
    %c0_12 = arith.constant 0 : index
    %16 = vector.load %arg2[%c0_10, %c0_11, %c0_12] : memref<1x8x64xf32, #tpu.memory_space<vmem>>, vector<1x8x64xf32>
    %17 = vector.shape_cast %16 : vector<1x8x64xf32> to vector<8x64xf32>
    %c0_13 = arith.constant 0 : index
    %c0_14 = arith.constant 0 : index
    %18 = vector.load %arg5[%c0_13, %c0_14] : memref<64x32xbf16, #tpu.memory_space<vmem>>, vector<64x32xbf16>
    %19 = arith.truncf %17 : vector<8x64xf32> to vector<8x64xbf16>
    %cst_15 = arith.constant dense<0.000000e+00> : vector<8x32xf32>
    %20 = tpu.matmul %19, %18, %cst_15 {dimension_numbers = #tpu.dot_dimension_numbers<[1], [0], [0], [1], [0, 0, 1, 1], [], []>} : vector<8x64xbf16>, vector<64x32xbf16>, vector<8x32xf32> -> vector<8x32xf32>
    %c0_16 = arith.constant 0 : index
    %c0_17 = arith.constant 0 : index
    %21 = vector.load %arg6[%c0_16, %c0_17] : memref<1x32xf32, #tpu.memory_space<vmem>>, vector<1x32xf32>
    %22 = vector.broadcast %21 : vector<1x32xf32> to vector<8x32xf32>
    %23 = arith.addf %20, %22 : vector<8x32xf32>
    %c0_18 = arith.constant 0 : index
    %c0_19 = arith.constant 0 : index
    %24 = vector.load %arg7[%c0_18, %c0_19] : memref<32x128xbf16, #tpu.memory_space<vmem>>, vector<32x128xbf16>
    %25 = arith.truncf %23 : vector<8x32xf32> to vector<8x32xbf16>
    %cst_20 = arith.constant dense<0.000000e+00> : vector<8x128xf32>
    %26 = tpu.matmul %25, %24, %cst_20 {dimension_numbers = #tpu.dot_dimension_numbers<[1], [0], [0], [1], [0, 0, 1, 1], [], []>} : vector<8x32xbf16>, vector<32x128xbf16>, vector<8x128xf32> -> vector<8x128xf32>
    %c0_21 = arith.constant 0 : index
    %c0_22 = arith.constant 0 : index
    %27 = vector.load %arg8[%c0_21, %c0_22] : memref<1x128xf32, #tpu.memory_space<vmem>>, vector<1x128xf32>
    %28 = vector.broadcast %27 : vector<1x128xf32> to vector<8x128xf32>
    %29 = arith.addf %26, %28 : vector<8x128xf32>
    %c0_23 = arith.constant 0 : index
    %c0_24 = arith.constant 0 : index
    %30 = vector.load %arg14[%c0_23, %c0_24] : memref<8x128xf32, #tpu.memory_space<vmem>>, vector<8x128xf32>
    tpu.vector_store %arg14[%c0_23, %c0_24], %29 {strides = array<i32>} : memref<8x128xf32, #tpu.memory_space<vmem>>, vector<8x128xf32>,
    %c0_25 = arith.constant 0 : index
    %c0_26 = arith.constant 0 : index
    %31 = vector.load %arg9[%c0_25, %c0_26] : memref<32x128xbf16, #tpu.memory_space<vmem>>, vector<32x128xbf16>
    %c0_27 = arith.constant 0 : index
    %c0_28 = arith.constant 0 : index
    %32 = vector.load %arg10[%c0_27, %c0_28] : memref<64x128xbf16, #tpu.memory_space<vmem>>, vector<64x128xbf16>
    %c0_29 = arith.constant 0 : index
    %c0_30 = arith.constant 0 : index
    %33 = vector.load %arg11[%c0_29, %c0_30] : memref<1x128xf32, #tpu.memory_space<vmem>>, vector<1x128xf32>
    %c0_i32 = arith.constant 0 : i32
    %34 = arith.index_cast %c0_i32 : i32 to index
    %c0_31 = arith.constant 0 : index
    %35 = vector.load %arg14[%34, %c0_31] : memref<8x128xf32, #tpu.memory_space<vmem>>, vector<1x128xf32>
    %36 = arith.truncf %11 : vector<1x32xf32> to vector<1x32xbf16>
    %cst_32 = arith.constant dense<0.000000e+00> : vector<1x128xf32>
    %37 = tpu.matmul %36, %31, %cst_32 {dimension_numbers = #tpu.dot_dimension_numbers<[1], [0], [0], [1], [0, 0, 1, 1], [], []>} : vector<1x32xbf16>, vector<32x128xbf16>, vector<1x128xf32> -> vector<1x128xf32>
    %38 = arith.addf %35, %37 : vector<1x128xf32>
    %39 = vector.extract_strided_slice %38 {offsets = [0, 0], sizes = [1, 32], strides = [1, 1]} : vector<1x128xf32> to vector<1x32xf32>
    %40 = arith.negf %39 : vector<1x32xf32>
    %41 = math.exp %40 : vector<1x32xf32>
    %cst_33 = arith.constant 1.000000e+00 : f32
    %42 = vector.broadcast %cst_33 : f32 to vector<1x32xf32>
    %43 = arith.addf %42, %41 : vector<1x32xf32>
    %44 = arith.divf %42, %43 : vector<1x32xf32>
    %45 = vector.extract_strided_slice %38 {offsets = [0, 32], sizes = [1, 32], strides = [1, 1]} : vector<1x128xf32> to vector<1x32xf32>
    %46 = arith.negf %45 : vector<1x32xf32>
    %47 = math.exp %46 : vector<1x32xf32>
    %cst_34 = arith.constant 1.000000e+00 : f32
    %48 = vector.broadcast %cst_34 : f32 to vector<1x32xf32>
    %49 = arith.addf %48, %47 : vector<1x32xf32>
    %50 = arith.divf %48, %49 : vector<1x32xf32>
    %51 = vector.extract_strided_slice %38 {offsets = [0, 64], sizes = [1, 32], strides = [1, 1]} : vector<1x128xf32> to vector<1x32xf32>
    %52 = math.tanh %51 : vector<1x32xf32>
    %53 = vector.extract_strided_slice %38 {offsets = [0, 96], sizes = [1, 32], strides = [1, 1]} : vector<1x128xf32> to vector<1x32xf32>
    %54 = arith.negf %53 : vector<1x32xf32>
    %55 = math.exp %54 : vector<1x32xf32>
    %cst_35 = arith.constant 1.000000e+00 : f32
    %56 = vector.broadcast %cst_35 : f32 to vector<1x32xf32>
    %57 = arith.addf %56, %55 : vector<1x32xf32>
    %58 = arith.divf %56, %57 : vector<1x32xf32>
    %59 = arith.mulf %50, %11 : vector<1x32xf32>
    %60 = arith.mulf %44, %52 : vector<1x32xf32>
    %61 = arith.addf %59, %60 : vector<1x32xf32>
    %62 = math.tanh %61 : vector<1x32xf32>
    %63 = arith.mulf %58, %62 : vector<1x32xf32>
    %64 = tpu.concatenate %63, %11 in 1 : vector<1x32xf32>, vector<1x32xf32> -> vector<1x64xf32>
    %65 = arith.truncf %64 : vector<1x64xf32> to vector<1x64xbf16>
    %cst_36 = arith.constant dense<0.000000e+00> : vector<1x128xf32>
    %66 = tpu.matmul %65, %32, %cst_36 {dimension_numbers = #tpu.dot_dimension_numbers<[1], [0], [0], [1], [0, 0, 1, 1], [], []>} : vector<1x64xbf16>, vector<64x128xbf16>, vector<1x128xf32> -> vector<1x128xf32>
    %67 = arith.addf %66, %33 : vector<1x128xf32>
    %68 = vector.extract_strided_slice %67 {offsets = [0, 0], sizes = [1, 32], strides = [1, 1]} : vector<1x128xf32> to vector<1x32xf32>
    %69 = arith.negf %68 : vector<1x32xf32>
    %70 = math.exp %69 : vector<1x32xf32>
    %cst_37 = arith.constant 1.000000e+00 : f32
    %71 = vector.broadcast %cst_37 : f32 to vector<1x32xf32>
    %72 = arith.addf %71, %70 : vector<1x32xf32>
    %73 = arith.divf %71, %72 : vector<1x32xf32>
    %74 = vector.extract_strided_slice %67 {offsets = [0, 32], sizes = [1, 32], strides = [1, 1]} : vector<1x128xf32> to vector<1x32xf32>
    %75 = arith.negf %74 : vector<1x32xf32>
    %76 = math.exp %75 : vector<1x32xf32>
    %cst_38 = arith.constant 1.000000e+00 : f32
    %77 = vector.broadcast %cst_38 : f32 to vector<1x32xf32>
    %78 = arith.addf %77, %76 : vector<1x32xf32>
    %79 = arith.divf %77, %78 : vector<1x32xf32>
    %80 = vector.extract_strided_slice %67 {offsets = [0, 64], sizes = [1, 32], strides = [1, 1]} : vector<1x128xf32> to vector<1x32xf32>
    %81 = math.tanh %80 : vector<1x32xf32>
    %82 = vector.extract_strided_slice %67 {offsets = [0, 96], sizes = [1, 32], strides = [1, 1]} : vector<1x128xf32> to vector<1x32xf32>
    %83 = arith.negf %82 : vector<1x32xf32>
    %84 = math.exp %83 : vector<1x32xf32>
    %cst_39 = arith.constant 1.000000e+00 : f32
    %85 = vector.broadcast %cst_39 : f32 to vector<1x32xf32>
    %86 = arith.addf %85, %84 : vector<1x32xf32>
    %87 = arith.divf %85, %86 : vector<1x32xf32>
    %88 = arith.mulf %79, %11 : vector<1x32xf32>
    %89 = arith.mulf %73, %81 : vector<1x32xf32>
    %90 = arith.addf %88, %89 : vector<1x32xf32>
    %91 = math.tanh %90 : vector<1x32xf32>
    %92 = arith.mulf %87, %91 : vector<1x32xf32>
    %c0_40 = arith.constant 0 : index
    %93 = arith.index_cast %c0_i32 : i32 to index
    %c0_41 = arith.constant 0 : index
    %94 = vector.load %arg12[%c0_40, %93, %c0_41] : memref<1x8x32xf32, #tpu.memory_space<vmem>>, vector<1x1x32xf32>
    %95 = vector.shape_cast %94 : vector<1x1x32xf32> to vector<1x32xf32>
    %96 = vector.shape_cast %92 : vector<1x32xf32> to vector<1x1x32xf32>
    tpu.vector_store %arg12[%c0_40, %93, %c0_41], %96 {strides = array<i32>} : memref<1x8x32xf32, #tpu.memory_space<vmem>>, vector<1x1x32xf32>,
    %c1_i32 = arith.constant 1 : i32
    %97 = arith.index_cast %c1_i32 : i32 to index
    %c0_42 = arith.constant 0 : index
    %98 = vector.load %arg14[%97, %c0_42] : memref<8x128xf32, #tpu.memory_space<vmem>>, vector<1x128xf32>
    %99 = arith.truncf %63 : vector<1x32xf32> to vector<1x32xbf16>
    %cst_43 = arith.constant dense<0.000000e+00> : vector<1x128xf32>
    %100 = tpu.matmul %99, %31, %cst_43 {dimension_numbers = #tpu.dot_dimension_numbers<[1], [0], [0], [1], [0, 0, 1, 1], [], []>} : vector<1x32xbf16>, vector<32x128xbf16>, vector<1x128xf32> -> vector<1x128xf32>
    %101 = arith.addf %98, %100 : vector<1x128xf32>
    %102 = vector.extract_strided_slice %101 {offsets = [0, 0], sizes = [1, 32], strides = [1, 1]} : vector<1x128xf32> to vector<1x32xf32>
    %103 = arith.negf %102 : vector<1x32xf32>
    %104 = math.exp %103 : vector<1x32xf32>
    %cst_44 = arith.constant 1.000000e+00 : f32
    %105 = vector.broadcast %cst_44 : f32 to vector<1x32xf32>
    %106 = arith.addf %105, %104 : vector<1x32xf32>
    %107 = arith.divf %105, %106 : vector<1x32xf32>
    %108 = vector.extract_strided_slice %101 {offsets = [0, 32], sizes = [1, 32], strides = [1, 1]} : vector<1x128xf32> to vector<1x32xf32>
    %109 = arith.negf %108 : vector<1x32xf32>
    %110 = math.exp %109 : vector<1x32xf32>
    %cst_45 = arith.constant 1.000000e+00 : f32
    %111 = vector.broadcast %cst_45 : f32 to vector<1x32xf32>
    %112 = arith.addf %111, %110 : vector<1x32xf32>
    %113 = arith.divf %111, %112 : vector<1x32xf32>
    %114 = vector.extract_strided_slice %101 {offsets = [0, 64], sizes = [1, 32], strides = [1, 1]} : vector<1x128xf32> to vector<1x32xf32>
    %115 = math.tanh %114 : vector<1x32xf32>
    %116 = vector.extract_strided_slice %101 {offsets = [0, 96], sizes = [1, 32], strides = [1, 1]} : vector<1x128xf32> to vector<1x32xf32>
    %117 = arith.negf %116 : vector<1x32xf32>
    %118 = math.exp %117 : vector<1x32xf32>
    %cst_46 = arith.constant 1.000000e+00 : f32
    %119 = vector.broadcast %cst_46 : f32 to vector<1x32xf32>
    %120 = arith.addf %119, %118 : vector<1x32xf32>
    %121 = arith.divf %119, %120 : vector<1x32xf32>
    %122 = arith.mulf %113, %61 : vector<1x32xf32>
    %123 = arith.mulf %107, %115 : vector<1x32xf32>
    %124 = arith.addf %122, %123 : vector<1x32xf32>
    %125 = math.tanh %124 : vector<1x32xf32>
    %126 = arith.mulf %121, %125 : vector<1x32xf32>
    %127 = tpu.concatenate %126, %92 in 1 : vector<1x32xf32>, vector<1x32xf32> -> vector<1x64xf32>
    %128 = arith.truncf %127 : vector<1x64xf32> to vector<1x64xbf16>
    %cst_47 = arith.constant dense<0.000000e+00> : vector<1x128xf32>
    %129 = tpu.matmul %128, %32, %cst_47 {dimension_numbers = #tpu.dot_dimension_numbers<[1], [0], [0], [1], [0, 0, 1, 1], [], []>} : vector<1x64xbf16>, vector<64x128xbf16>, vector<1x128xf32> -> vector<1x128xf32>
    %130 = arith.addf %129, %33 : vector<1x128xf32>
    %131 = vector.extract_strided_slice %130 {offsets = [0, 0], sizes = [1, 32], strides = [1, 1]} : vector<1x128xf32> to vector<1x32xf32>
    %132 = arith.negf %131 : vector<1x32xf32>
    %133 = math.exp %132 : vector<1x32xf32>
    %cst_48 = arith.constant 1.000000e+00 : f32
    %134 = vector.broadcast %cst_48 : f32 to vector<1x32xf32>
    %135 = arith.addf %134, %133 : vector<1x32xf32>
    %136 = arith.divf %134, %135 : vector<1x32xf32>
    %137 = vector.extract_strided_slice %130 {offsets = [0, 32], sizes = [1, 32], strides = [1, 1]} : vector<1x128xf32> to vector<1x32xf32>
    %138 = arith.negf %137 : vector<1x32xf32>
    %139 = math.exp %138 : vector<1x32xf32>
    %cst_49 = arith.constant 1.000000e+00 : f32
    %140 = vector.broadcast %cst_49 : f32 to vector<1x32xf32>
    %141 = arith.addf %140, %139 : vector<1x32xf32>
    %142 = arith.divf %140, %141 : vector<1x32xf32>
    %143 = vector.extract_strided_slice %130 {offsets = [0, 64], sizes = [1, 32], strides = [1, 1]} : vector<1x128xf32> to vector<1x32xf32>
    %144 = math.tanh %143 : vector<1x32xf32>
    %145 = vector.extract_strided_slice %130 {offsets = [0, 96], sizes = [1, 32], strides = [1, 1]} : vector<1x128xf32> to vector<1x32xf32>
    %146 = arith.negf %145 : vector<1x32xf32>
    %147 = math.exp %146 : vector<1x32xf32>
    %cst_50 = arith.constant 1.000000e+00 : f32
    %148 = vector.broadcast %cst_50 : f32 to vector<1x32xf32>
    %149 = arith.addf %148, %147 : vector<1x32xf32>
    %150 = arith.divf %148, %149 : vector<1x32xf32>
    %151 = arith.mulf %142, %90 : vector<1x32xf32>
    %152 = arith.mulf %136, %144 : vector<1x32xf32>
    %153 = arith.addf %151, %152 : vector<1x32xf32>
    %154 = math.tanh %153 : vector<1x32xf32>
    %155 = arith.mulf %150, %154 : vector<1x32xf32>
    %c0_51 = arith.constant 0 : index
    %156 = arith.index_cast %c1_i32 : i32 to index
    %c0_52 = arith.constant 0 : index
    %157 = vector.load %arg12[%c0_51, %156, %c0_52] : memref<1x8x32xf32, #tpu.memory_space<vmem>>, vector<1x1x32xf32>
    %158 = vector.shape_cast %157 : vector<1x1x32xf32> to vector<1x32xf32>
    %159 = vector.shape_cast %155 : vector<1x32xf32> to vector<1x1x32xf32>
    tpu.vector_store %arg12[%c0_51, %156, %c0_52], %159 {strides = array<i32>} : memref<1x8x32xf32, #tpu.memory_space<vmem>>, vector<1x1x32xf32>,
    %c2_i32 = arith.constant 2 : i32
    %160 = arith.index_cast %c2_i32 : i32 to index
    %c0_53 = arith.constant 0 : index
    %161 = vector.load %arg14[%160, %c0_53] : memref<8x128xf32, #tpu.memory_space<vmem>>, vector<1x128xf32>
    %162 = arith.truncf %126 : vector<1x32xf32> to vector<1x32xbf16>
    %cst_54 = arith.constant dense<0.000000e+00> : vector<1x128xf32>
    %163 = tpu.matmul %162, %31, %cst_54 {dimension_numbers = #tpu.dot_dimension_numbers<[1], [0], [0], [1], [0, 0, 1, 1], [], []>} : vector<1x32xbf16>, vector<32x128xbf16>, vector<1x128xf32> -> vector<1x128xf32>
    %164 = arith.addf %161, %163 : vector<1x128xf32>
    %165 = vector.extract_strided_slice %164 {offsets = [0, 0], sizes = [1, 32], strides = [1, 1]} : vector<1x128xf32> to vector<1x32xf32>
    %166 = arith.negf %165 : vector<1x32xf32>
    %167 = math.exp %166 : vector<1x32xf32>
    %cst_55 = arith.constant 1.000000e+00 : f32
    %168 = vector.broadcast %cst_55 : f32 to vector<1x32xf32>
    %169 = arith.addf %168, %167 : vector<1x32xf32>
    %170 = arith.divf %168, %169 : vector<1x32xf32>
    %171 = vector.extract_strided_slice %164 {offsets = [0, 32], sizes = [1, 32], strides = [1, 1]} : vector<1x128xf32> to vector<1x32xf32>
    %172 = arith.negf %171 : vector<1x32xf32>
    %173 = math.exp %172 : vector<1x32xf32>
    %cst_56 = arith.constant 1.000000e+00 : f32
    %174 = vector.broadcast %cst_56 : f32 to vector<1x32xf32>
    %175 = arith.addf %174, %173 : vector<1x32xf32>
    %176 = arith.divf %174, %175 : vector<1x32xf32>
    %177 = vector.extract_strided_slice %164 {offsets = [0, 64], sizes = [1, 32], strides = [1, 1]} : vector<1x128xf32> to vector<1x32xf32>
    %178 = math.tanh %177 : vector<1x32xf32>
    %179 = vector.extract_strided_slice %164 {offsets = [0, 96], sizes = [1, 32], strides = [1, 1]} : vector<1x128xf32> to vector<1x32xf32>
    %180 = arith.negf %179 : vector<1x32xf32>
    %181 = math.exp %180 : vector<1x32xf32>
    %cst_57 = arith.constant 1.000000e+00 : f32
    %182 = vector.broadcast %cst_57 : f32 to vector<1x32xf32>
    %183 = arith.addf %182, %181 : vector<1x32xf32>
    %184 = arith.divf %182, %183 : vector<1x32xf32>
    %185 = arith.mulf %176, %124 : vector<1x32xf32>
    %186 = arith.mulf %170, %178 : vector<1x32xf32>
    %187 = arith.addf %185, %186 : vector<1x32xf32>
    %188 = math.tanh %187 : vector<1x32xf32>
    %189 = arith.mulf %184, %188 : vector<1x32xf32>
    %190 = tpu.concatenate %189, %155 in 1 : vector<1x32xf32>, vector<1x32xf32> -> vector<1x64xf32>
    %191 = arith.truncf %190 : vector<1x64xf32> to vector<1x64xbf16>
    %cst_58 = arith.constant dense<0.000000e+00> : vector<1x128xf32>
    %192 = tpu.matmul %191, %32, %cst_58 {dimension_numbers = #tpu.dot_dimension_numbers<[1], [0], [0], [1], [0, 0, 1, 1], [], []>} : vector<1x64xbf16>, vector<64x128xbf16>, vector<1x128xf32> -> vector<1x128xf32>
    %193 = arith.addf %192, %33 : vector<1x128xf32>
    %194 = vector.extract_strided_slice %193 {offsets = [0, 0], sizes = [1, 32], strides = [1, 1]} : vector<1x128xf32> to vector<1x32xf32>
    %195 = arith.negf %194 : vector<1x32xf32>
    %196 = math.exp %195 : vector<1x32xf32>
    %cst_59 = arith.constant 1.000000e+00 : f32
    %197 = vector.broadcast %cst_59 : f32 to vector<1x32xf32>
    %198 = arith.addf %197, %196 : vector<1x32xf32>
    %199 = arith.divf %197, %198 : vector<1x32xf32>
    %200 = vector.extract_strided_slice %193 {offsets = [0, 32], sizes = [1, 32], strides = [1, 1]} : vector<1x128xf32> to vector<1x32xf32>
    %201 = arith.negf %200 : vector<1x32xf32>
    %202 = math.exp %201 : vector<1x32xf32>
    %cst_60 = arith.constant 1.000000e+00 : f32
    %203 = vector.broadcast %cst_60 : f32 to vector<1x32xf32>
    %204 = arith.addf %203, %202 : vector<1x32xf32>
    %205 = arith.divf %203, %204 : vector<1x32xf32>
    %206 = vector.extract_strided_slice %193 {offsets = [0, 64], sizes = [1, 32], strides = [1, 1]} : vector<1x128xf32> to vector<1x32xf32>
    %207 = math.tanh %206 : vector<1x32xf32>
    %208 = vector.extract_strided_slice %193 {offsets = [0, 96], sizes = [1, 32], strides = [1, 1]} : vector<1x128xf32> to vector<1x32xf32>
    %209 = arith.negf %208 : vector<1x32xf32>
    %210 = math.exp %209 : vector<1x32xf32>
    %cst_61 = arith.constant 1.000000e+00 : f32
    %211 = vector.broadcast %cst_61 : f32 to vector<1x32xf32>
    %212 = arith.addf %211, %210 : vector<1x32xf32>
    %213 = arith.divf %211, %212 : vector<1x32xf32>
    %214 = arith.mulf %205, %153 : vector<1x32xf32>
    %215 = arith.mulf %199, %207 : vector<1x32xf32>
    %216 = arith.addf %214, %215 : vector<1x32xf32>
    %217 = math.tanh %216 : vector<1x32xf32>
    %218 = arith.mulf %213, %217 : vector<1x32xf32>
    %c0_62 = arith.constant 0 : index
    %219 = arith.index_cast %c2_i32 : i32 to index
    %c0_63 = arith.constant 0 : index
    %220 = vector.load %arg12[%c0_62, %219, %c0_63] : memref<1x8x32xf32, #tpu.memory_space<vmem>>, vector<1x1x32xf32>
    %221 = vector.shape_cast %220 : vector<1x1x32xf32> to vector<1x32xf32>
    %222 = vector.shape_cast %218 : vector<1x32xf32> to vector<1x1x32xf32>
    tpu.vector_store %arg12[%c0_62, %219, %c0_63], %222 {strides = array<i32>} : memref<1x8x32xf32, #tpu.memory_space<vmem>>, vector<1x1x32xf32>,
    %c3_i32 = arith.constant 3 : i32
    %223 = arith.index_cast %c3_i32 : i32 to index
    %c0_64 = arith.constant 0 : index
    %224 = vector.load %arg14[%223, %c0_64] : memref<8x128xf32, #tpu.memory_space<vmem>>, vector<1x128xf32>
    %225 = arith.truncf %189 : vector<1x32xf32> to vector<1x32xbf16>
    %cst_65 = arith.constant dense<0.000000e+00> : vector<1x128xf32>
    %226 = tpu.matmul %225, %31, %cst_65 {dimension_numbers = #tpu.dot_dimension_numbers<[1], [0], [0], [1], [0, 0, 1, 1], [], []>} : vector<1x32xbf16>, vector<32x128xbf16>, vector<1x128xf32> -> vector<1x128xf32>
    %227 = arith.addf %224, %226 : vector<1x128xf32>
    %228 = vector.extract_strided_slice %227 {offsets = [0, 0], sizes = [1, 32], strides = [1, 1]} : vector<1x128xf32> to vector<1x32xf32>
    %229 = arith.negf %228 : vector<1x32xf32>
    %230 = math.exp %229 : vector<1x32xf32>
    %cst_66 = arith.constant 1.000000e+00 : f32
    %231 = vector.broadcast %cst_66 : f32 to vector<1x32xf32>
    %232 = arith.addf %231, %230 : vector<1x32xf32>
    %233 = arith.divf %231, %232 : vector<1x32xf32>
    %234 = vector.extract_strided_slice %227 {offsets = [0, 32], sizes = [1, 32], strides = [1, 1]} : vector<1x128xf32> to vector<1x32xf32>
    %235 = arith.negf %234 : vector<1x32xf32>
    %236 = math.exp %235 : vector<1x32xf32>
    %cst_67 = arith.constant 1.000000e+00 : f32
    %237 = vector.broadcast %cst_67 : f32 to vector<1x32xf32>
    %238 = arith.addf %237, %236 : vector<1x32xf32>
    %239 = arith.divf %237, %238 : vector<1x32xf32>
    %240 = vector.extract_strided_slice %227 {offsets = [0, 64], sizes = [1, 32], strides = [1, 1]} : vector<1x128xf32> to vector<1x32xf32>
    %241 = math.tanh %240 : vector<1x32xf32>
    %242 = vector.extract_strided_slice %227 {offsets = [0, 96], sizes = [1, 32], strides = [1, 1]} : vector<1x128xf32> to vector<1x32xf32>
    %243 = arith.negf %242 : vector<1x32xf32>
    %244 = math.exp %243 : vector<1x32xf32>
    %cst_68 = arith.constant 1.000000e+00 : f32
    %245 = vector.broadcast %cst_68 : f32 to vector<1x32xf32>
    %246 = arith.addf %245, %244 : vector<1x32xf32>
    %247 = arith.divf %245, %246 : vector<1x32xf32>
    %248 = arith.mulf %239, %187 : vector<1x32xf32>
    %249 = arith.mulf %233, %241 : vector<1x32xf32>
    %250 = arith.addf %248, %249 : vector<1x32xf32>
    %251 = math.tanh %250 : vector<1x32xf32>
    %252 = arith.mulf %247, %251 : vector<1x32xf32>
    %253 = tpu.concatenate %252, %218 in 1 : vector<1x32xf32>, vector<1x32xf32> -> vector<1x64xf32>
    %254 = arith.truncf %253 : vector<1x64xf32> to vector<1x64xbf16>
    %cst_69 = arith.constant dense<0.000000e+00> : vector<1x128xf32>
    %255 = tpu.matmul %254, %32, %cst_69 {dimension_numbers = #tpu.dot_dimension_numbers<[1], [0], [0], [1], [0, 0, 1, 1], [], []>} : vector<1x64xbf16>, vector<64x128xbf16>, vector<1x128xf32> -> vector<1x128xf32>
    %256 = arith.addf %255, %33 : vector<1x128xf32>
    %257 = vector.extract_strided_slice %256 {offsets = [0, 0], sizes = [1, 32], strides = [1, 1]} : vector<1x128xf32> to vector<1x32xf32>
    %258 = arith.negf %257 : vector<1x32xf32>
    %259 = math.exp %258 : vector<1x32xf32>
    %cst_70 = arith.constant 1.000000e+00 : f32
    %260 = vector.broadcast %cst_70 : f32 to vector<1x32xf32>
    %261 = arith.addf %260, %259 : vector<1x32xf32>
    %262 = arith.divf %260, %261 : vector<1x32xf32>
    %263 = vector.extract_strided_slice %256 {offsets = [0, 32], sizes = [1, 32], strides = [1, 1]} : vector<1x128xf32> to vector<1x32xf32>
    %264 = arith.negf %263 : vector<1x32xf32>
    %265 = math.exp %264 : vector<1x32xf32>
    %cst_71 = arith.constant 1.000000e+00 : f32
    %266 = vector.broadcast %cst_71 : f32 to vector<1x32xf32>
    %267 = arith.addf %266, %265 : vector<1x32xf32>
    %268 = arith.divf %266, %267 : vector<1x32xf32>
    %269 = vector.extract_strided_slice %256 {offsets = [0, 64], sizes = [1, 32], strides = [1, 1]} : vector<1x128xf32> to vector<1x32xf32>
    %270 = math.tanh %269 : vector<1x32xf32>
    %271 = vector.extract_strided_slice %256 {offsets = [0, 96], sizes = [1, 32], strides = [1, 1]} : vector<1x128xf32> to vector<1x32xf32>
    %272 = arith.negf %271 : vector<1x32xf32>
    %273 = math.exp %272 : vector<1x32xf32>
    %cst_72 = arith.constant 1.000000e+00 : f32
    %274 = vector.broadcast %cst_72 : f32 to vector<1x32xf32>
    %275 = arith.addf %274, %273 : vector<1x32xf32>
    %276 = arith.divf %274, %275 : vector<1x32xf32>
    %277 = arith.mulf %268, %216 : vector<1x32xf32>
    %278 = arith.mulf %262, %270 : vector<1x32xf32>
    %279 = arith.addf %277, %278 : vector<1x32xf32>
    %280 = math.tanh %279 : vector<1x32xf32>
    %281 = arith.mulf %276, %280 : vector<1x32xf32>
    %c0_73 = arith.constant 0 : index
    %282 = arith.index_cast %c3_i32 : i32 to index
    %c0_74 = arith.constant 0 : index
    %283 = vector.load %arg12[%c0_73, %282, %c0_74] : memref<1x8x32xf32, #tpu.memory_space<vmem>>, vector<1x1x32xf32>
    %284 = vector.shape_cast %283 : vector<1x1x32xf32> to vector<1x32xf32>
    %285 = vector.shape_cast %281 : vector<1x32xf32> to vector<1x1x32xf32>
    tpu.vector_store %arg12[%c0_73, %282, %c0_74], %285 {strides = array<i32>} : memref<1x8x32xf32, #tpu.memory_space<vmem>>, vector<1x1x32xf32>,
    %c4_i32 = arith.constant 4 : i32
    %286 = arith.index_cast %c4_i32 : i32 to index
    %c0_75 = arith.constant 0 : index
    %287 = vector.load %arg14[%286, %c0_75] : memref<8x128xf32, #tpu.memory_space<vmem>>, vector<1x128xf32>
    %288 = arith.truncf %252 : vector<1x32xf32> to vector<1x32xbf16>
    %cst_76 = arith.constant dense<0.000000e+00> : vector<1x128xf32>
    %289 = tpu.matmul %288, %31, %cst_76 {dimension_numbers = #tpu.dot_dimension_numbers<[1], [0], [0], [1], [0, 0, 1, 1], [], []>} : vector<1x32xbf16>, vector<32x128xbf16>, vector<1x128xf32> -> vector<1x128xf32>
    %290 = arith.addf %287, %289 : vector<1x128xf32>
    %291 = vector.extract_strided_slice %290 {offsets = [0, 0], sizes = [1, 32], strides = [1, 1]} : vector<1x128xf32> to vector<1x32xf32>
    %292 = arith.negf %291 : vector<1x32xf32>
    %293 = math.exp %292 : vector<1x32xf32>
    %cst_77 = arith.constant 1.000000e+00 : f32
    %294 = vector.broadcast %cst_77 : f32 to vector<1x32xf32>
    %295 = arith.addf %294, %293 : vector<1x32xf32>
    %296 = arith.divf %294, %295 : vector<1x32xf32>
    %297 = vector.extract_strided_slice %290 {offsets = [0, 32], sizes = [1, 32], strides = [1, 1]} : vector<1x128xf32> to vector<1x32xf32>
    %298 = arith.negf %297 : vector<1x32xf32>
    %299 = math.exp %298 : vector<1x32xf32>
    %cst_78 = arith.constant 1.000000e+00 : f32
    %300 = vector.broadcast %cst_78 : f32 to vector<1x32xf32>
    %301 = arith.addf %300, %299 : vector<1x32xf32>
    %302 = arith.divf %300, %301 : vector<1x32xf32>
    %303 = vector.extract_strided_slice %290 {offsets = [0, 64], sizes = [1, 32], strides = [1, 1]} : vector<1x128xf32> to vector<1x32xf32>
    %304 = math.tanh %303 : vector<1x32xf32>
    %305 = vector.extract_strided_slice %290 {offsets = [0, 96], sizes = [1, 32], strides = [1, 1]} : vector<1x128xf32> to vector<1x32xf32>
    %306 = arith.negf %305 : vector<1x32xf32>
    %307 = math.exp %306 : vector<1x32xf32>
    %cst_79 = arith.constant 1.000000e+00 : f32
    %308 = vector.broadcast %cst_79 : f32 to vector<1x32xf32>
    %309 = arith.addf %308, %307 : vector<1x32xf32>
    %310 = arith.divf %308, %309 : vector<1x32xf32>
    %311 = arith.mulf %302, %250 : vector<1x32xf32>
    %312 = arith.mulf %296, %304 : vector<1x32xf32>
    %313 = arith.addf %311, %312 : vector<1x32xf32>
    %314 = math.tanh %313 : vector<1x32xf32>
    %315 = arith.mulf %310, %314 : vector<1x32xf32>
    %316 = tpu.concatenate %315, %281 in 1 : vector<1x32xf32>, vector<1x32xf32> -> vector<1x64xf32>
    %317 = arith.truncf %316 : vector<1x64xf32> to vector<1x64xbf16>
    %cst_80 = arith.constant dense<0.000000e+00> : vector<1x128xf32>
    %318 = tpu.matmul %317, %32, %cst_80 {dimension_numbers = #tpu.dot_dimension_numbers<[1], [0], [0], [1], [0, 0, 1, 1], [], []>} : vector<1x64xbf16>, vector<64x128xbf16>, vector<1x128xf32> -> vector<1x128xf32>
    %319 = arith.addf %318, %33 : vector<1x128xf32>
    %320 = vector.extract_strided_slice %319 {offsets = [0, 0], sizes = [1, 32], strides = [1, 1]} : vector<1x128xf32> to vector<1x32xf32>
    %321 = arith.negf %320 : vector<1x32xf32>
    %322 = math.exp %321 : vector<1x32xf32>
    %cst_81 = arith.constant 1.000000e+00 : f32
    %323 = vector.broadcast %cst_81 : f32 to vector<1x32xf32>
    %324 = arith.addf %323, %322 : vector<1x32xf32>
    %325 = arith.divf %323, %324 : vector<1x32xf32>
    %326 = vector.extract_strided_slice %319 {offsets = [0, 32], sizes = [1, 32], strides = [1, 1]} : vector<1x128xf32> to vector<1x32xf32>
    %327 = arith.negf %326 : vector<1x32xf32>
    %328 = math.exp %327 : vector<1x32xf32>
    %cst_82 = arith.constant 1.000000e+00 : f32
    %329 = vector.broadcast %cst_82 : f32 to vector<1x32xf32>
    %330 = arith.addf %329, %328 : vector<1x32xf32>
    %331 = arith.divf %329, %330 : vector<1x32xf32>
    %332 = vector.extract_strided_slice %319 {offsets = [0, 64], sizes = [1, 32], strides = [1, 1]} : vector<1x128xf32> to vector<1x32xf32>
    %333 = math.tanh %332 : vector<1x32xf32>
    %334 = vector.extract_strided_slice %319 {offsets = [0, 96], sizes = [1, 32], strides = [1, 1]} : vector<1x128xf32> to vector<1x32xf32>
    %335 = arith.negf %334 : vector<1x32xf32>
    %336 = math.exp %335 : vector<1x32xf32>
    %cst_83 = arith.constant 1.000000e+00 : f32
    %337 = vector.broadcast %cst_83 : f32 to vector<1x32xf32>
    %338 = arith.addf %337, %336 : vector<1x32xf32>
    %339 = arith.divf %337, %338 : vector<1x32xf32>
    %340 = arith.mulf %331, %279 : vector<1x32xf32>
    %341 = arith.mulf %325, %333 : vector<1x32xf32>
    %342 = arith.addf %340, %341 : vector<1x32xf32>
    %343 = math.tanh %342 : vector<1x32xf32>
    %344 = arith.mulf %339, %343 : vector<1x32xf32>
    %c0_84 = arith.constant 0 : index
    %345 = arith.index_cast %c4_i32 : i32 to index
    %c0_85 = arith.constant 0 : index
    %346 = vector.load %arg12[%c0_84, %345, %c0_85] : memref<1x8x32xf32, #tpu.memory_space<vmem>>, vector<1x1x32xf32>
    %347 = vector.shape_cast %346 : vector<1x1x32xf32> to vector<1x32xf32>
    %348 = vector.shape_cast %344 : vector<1x32xf32> to vector<1x1x32xf32>
    tpu.vector_store %arg12[%c0_84, %345, %c0_85], %348 {strides = array<i32>} : memref<1x8x32xf32, #tpu.memory_space<vmem>>, vector<1x1x32xf32>,
    %c5_i32 = arith.constant 5 : i32
    %349 = arith.index_cast %c5_i32 : i32 to index
    %c0_86 = arith.constant 0 : index
    %350 = vector.load %arg14[%349, %c0_86] : memref<8x128xf32, #tpu.memory_space<vmem>>, vector<1x128xf32>
    %351 = arith.truncf %315 : vector<1x32xf32> to vector<1x32xbf16>
    %cst_87 = arith.constant dense<0.000000e+00> : vector<1x128xf32>
    %352 = tpu.matmul %351, %31, %cst_87 {dimension_numbers = #tpu.dot_dimension_numbers<[1], [0], [0], [1], [0, 0, 1, 1], [], []>} : vector<1x32xbf16>, vector<32x128xbf16>, vector<1x128xf32> -> vector<1x128xf32>
    %353 = arith.addf %350, %352 : vector<1x128xf32>
    %354 = vector.extract_strided_slice %353 {offsets = [0, 0], sizes = [1, 32], strides = [1, 1]} : vector<1x128xf32> to vector<1x32xf32>
    %355 = arith.negf %354 : vector<1x32xf32>
    %356 = math.exp %355 : vector<1x32xf32>
    %cst_88 = arith.constant 1.000000e+00 : f32
    %357 = vector.broadcast %cst_88 : f32 to vector<1x32xf32>
    %358 = arith.addf %357, %356 : vector<1x32xf32>
    %359 = arith.divf %357, %358 : vector<1x32xf32>
    %360 = vector.extract_strided_slice %353 {offsets = [0, 32], sizes = [1, 32], strides = [1, 1]} : vector<1x128xf32> to vector<1x32xf32>
    %361 = arith.negf %360 : vector<1x32xf32>
    %362 = math.exp %361 : vector<1x32xf32>
    %cst_89 = arith.constant 1.000000e+00 : f32
    %363 = vector.broadcast %cst_89 : f32 to vector<1x32xf32>
    %364 = arith.addf %363, %362 : vector<1x32xf32>
    %365 = arith.divf %363, %364 : vector<1x32xf32>
    %366 = vector.extract_strided_slice %353 {offsets = [0, 64], sizes = [1, 32], strides = [1, 1]} : vector<1x128xf32> to vector<1x32xf32>
    %367 = math.tanh %366 : vector<1x32xf32>
    %368 = vector.extract_strided_slice %353 {offsets = [0, 96], sizes = [1, 32], strides = [1, 1]} : vector<1x128xf32> to vector<1x32xf32>
    %369 = arith.negf %368 : vector<1x32xf32>
    %370 = math.exp %369 : vector<1x32xf32>
    %cst_90 = arith.constant 1.000000e+00 : f32
    %371 = vector.broadcast %cst_90 : f32 to vector<1x32xf32>
    %372 = arith.addf %371, %370 : vector<1x32xf32>
    %373 = arith.divf %371, %372 : vector<1x32xf32>
    %374 = arith.mulf %365, %313 : vector<1x32xf32>
    %375 = arith.mulf %359, %367 : vector<1x32xf32>
    %376 = arith.addf %374, %375 : vector<1x32xf32>
    %377 = math.tanh %376 : vector<1x32xf32>
    %378 = arith.mulf %373, %377 : vector<1x32xf32>
    %379 = tpu.concatenate %378, %344 in 1 : vector<1x32xf32>, vector<1x32xf32> -> vector<1x64xf32>
    %380 = arith.truncf %379 : vector<1x64xf32> to vector<1x64xbf16>
    %cst_91 = arith.constant dense<0.000000e+00> : vector<1x128xf32>
    %381 = tpu.matmul %380, %32, %cst_91 {dimension_numbers = #tpu.dot_dimension_numbers<[1], [0], [0], [1], [0, 0, 1, 1], [], []>} : vector<1x64xbf16>, vector<64x128xbf16>, vector<1x128xf32> -> vector<1x128xf32>
    %382 = arith.addf %381, %33 : vector<1x128xf32>
    %383 = vector.extract_strided_slice %382 {offsets = [0, 0], sizes = [1, 32], strides = [1, 1]} : vector<1x128xf32> to vector<1x32xf32>
    %384 = arith.negf %383 : vector<1x32xf32>
    %385 = math.exp %384 : vector<1x32xf32>
    %cst_92 = arith.constant 1.000000e+00 : f32
    %386 = vector.broadcast %cst_92 : f32 to vector<1x32xf32>
    %387 = arith.addf %386, %385 : vector<1x32xf32>
    %388 = arith.divf %386, %387 : vector<1x32xf32>
    %389 = vector.extract_strided_slice %382 {offsets = [0, 32], sizes = [1, 32], strides = [1, 1]} : vector<1x128xf32> to vector<1x32xf32>
    %390 = arith.negf %389 : vector<1x32xf32>
    %391 = math.exp %390 : vector<1x32xf32>
    %cst_93 = arith.constant 1.000000e+00 : f32
    %392 = vector.broadcast %cst_93 : f32 to vector<1x32xf32>
    %393 = arith.addf %392, %391 : vector<1x32xf32>
    %394 = arith.divf %392, %393 : vector<1x32xf32>
    %395 = vector.extract_strided_slice %382 {offsets = [0, 64], sizes = [1, 32], strides = [1, 1]} : vector<1x128xf32> to vector<1x32xf32>
    %396 = math.tanh %395 : vector<1x32xf32>
    %397 = vector.extract_strided_slice %382 {offsets = [0, 96], sizes = [1, 32], strides = [1, 1]} : vector<1x128xf32> to vector<1x32xf32>
    %398 = arith.negf %397 : vector<1x32xf32>
    %399 = math.exp %398 : vector<1x32xf32>
    %cst_94 = arith.constant 1.000000e+00 : f32
    %400 = vector.broadcast %cst_94 : f32 to vector<1x32xf32>
    %401 = arith.addf %400, %399 : vector<1x32xf32>
    %402 = arith.divf %400, %401 : vector<1x32xf32>
    %403 = arith.mulf %394, %342 : vector<1x32xf32>
    %404 = arith.mulf %388, %396 : vector<1x32xf32>
    %405 = arith.addf %403, %404 : vector<1x32xf32>
    %406 = math.tanh %405 : vector<1x32xf32>
    %407 = arith.mulf %402, %406 : vector<1x32xf32>
    %c0_95 = arith.constant 0 : index
    %408 = arith.index_cast %c5_i32 : i32 to index
    %c0_96 = arith.constant 0 : index
    %409 = vector.load %arg12[%c0_95, %408, %c0_96] : memref<1x8x32xf32, #tpu.memory_space<vmem>>, vector<1x1x32xf32>
    %410 = vector.shape_cast %409 : vector<1x1x32xf32> to vector<1x32xf32>
    %411 = vector.shape_cast %407 : vector<1x32xf32> to vector<1x1x32xf32>
    tpu.vector_store %arg12[%c0_95, %408, %c0_96], %411 {strides = array<i32>} : memref<1x8x32xf32, #tpu.memory_space<vmem>>, vector<1x1x32xf32>,
    %c6_i32 = arith.constant 6 : i32
    %412 = arith.index_cast %c6_i32 : i32 to index
    %c0_97 = arith.constant 0 : index
    %413 = vector.load %arg14[%412, %c0_97] : memref<8x128xf32, #tpu.memory_space<vmem>>, vector<1x128xf32>
    %414 = arith.truncf %378 : vector<1x32xf32> to vector<1x32xbf16>
    %cst_98 = arith.constant dense<0.000000e+00> : vector<1x128xf32>
    %415 = tpu.matmul %414, %31, %cst_98 {dimension_numbers = #tpu.dot_dimension_numbers<[1], [0], [0], [1], [0, 0, 1, 1], [], []>} : vector<1x32xbf16>, vector<32x128xbf16>, vector<1x128xf32> -> vector<1x128xf32>
    %416 = arith.addf %413, %415 : vector<1x128xf32>
    %417 = vector.extract_strided_slice %416 {offsets = [0, 0], sizes = [1, 32], strides = [1, 1]} : vector<1x128xf32> to vector<1x32xf32>
    %418 = arith.negf %417 : vector<1x32xf32>
    %419 = math.exp %418 : vector<1x32xf32>
    %cst_99 = arith.constant 1.000000e+00 : f32
    %420 = vector.broadcast %cst_99 : f32 to vector<1x32xf32>
    %421 = arith.addf %420, %419 : vector<1x32xf32>
    %422 = arith.divf %420, %421 : vector<1x32xf32>
    %423 = vector.extract_strided_slice %416 {offsets = [0, 32], sizes = [1, 32], strides = [1, 1]} : vector<1x128xf32> to vector<1x32xf32>
    %424 = arith.negf %423 : vector<1x32xf32>
    %425 = math.exp %424 : vector<1x32xf32>
    %cst_100 = arith.constant 1.000000e+00 : f32
    %426 = vector.broadcast %cst_100 : f32 to vector<1x32xf32>
    %427 = arith.addf %426, %425 : vector<1x32xf32>
    %428 = arith.divf %426, %427 : vector<1x32xf32>
    %429 = vector.extract_strided_slice %416 {offsets = [0, 64], sizes = [1, 32], strides = [1, 1]} : vector<1x128xf32> to vector<1x32xf32>
    %430 = math.tanh %429 : vector<1x32xf32>
    %431 = vector.extract_strided_slice %416 {offsets = [0, 96], sizes = [1, 32], strides = [1, 1]} : vector<1x128xf32> to vector<1x32xf32>
    %432 = arith.negf %431 : vector<1x32xf32>
    %433 = math.exp %432 : vector<1x32xf32>
    %cst_101 = arith.constant 1.000000e+00 : f32
    %434 = vector.broadcast %cst_101 : f32 to vector<1x32xf32>
    %435 = arith.addf %434, %433 : vector<1x32xf32>
    %436 = arith.divf %434, %435 : vector<1x32xf32>
    %437 = arith.mulf %428, %376 : vector<1x32xf32>
    %438 = arith.mulf %422, %430 : vector<1x32xf32>
    %439 = arith.addf %437, %438 : vector<1x32xf32>
    %440 = math.tanh %439 : vector<1x32xf32>
    %441 = arith.mulf %436, %440 : vector<1x32xf32>
    %442 = tpu.concatenate %441, %407 in 1 : vector<1x32xf32>, vector<1x32xf32> -> vector<1x64xf32>
    %443 = arith.truncf %442 : vector<1x64xf32> to vector<1x64xbf16>
    %cst_102 = arith.constant dense<0.000000e+00> : vector<1x128xf32>
    %444 = tpu.matmul %443, %32, %cst_102 {dimension_numbers = #tpu.dot_dimension_numbers<[1], [0], [0], [1], [0, 0, 1, 1], [], []>} : vector<1x64xbf16>, vector<64x128xbf16>, vector<1x128xf32> -> vector<1x128xf32>
    %445 = arith.addf %444, %33 : vector<1x128xf32>
    %446 = vector.extract_strided_slice %445 {offsets = [0, 0], sizes = [1, 32], strides = [1, 1]} : vector<1x128xf32> to vector<1x32xf32>
    %447 = arith.negf %446 : vector<1x32xf32>
    %448 = math.exp %447 : vector<1x32xf32>
    %cst_103 = arith.constant 1.000000e+00 : f32
    %449 = vector.broadcast %cst_103 : f32 to vector<1x32xf32>
    %450 = arith.addf %449, %448 : vector<1x32xf32>
    %451 = arith.divf %449, %450 : vector<1x32xf32>
    %452 = vector.extract_strided_slice %445 {offsets = [0, 32], sizes = [1, 32], strides = [1, 1]} : vector<1x128xf32> to vector<1x32xf32>
    %453 = arith.negf %452 : vector<1x32xf32>
    %454 = math.exp %453 : vector<1x32xf32>
    %cst_104 = arith.constant 1.000000e+00 : f32
    %455 = vector.broadcast %cst_104 : f32 to vector<1x32xf32>
    %456 = arith.addf %455, %454 : vector<1x32xf32>
    %457 = arith.divf %455, %456 : vector<1x32xf32>
    %458 = vector.extract_strided_slice %445 {offsets = [0, 64], sizes = [1, 32], strides = [1, 1]} : vector<1x128xf32> to vector<1x32xf32>
    %459 = math.tanh %458 : vector<1x32xf32>
    %460 = vector.extract_strided_slice %445 {offsets = [0, 96], sizes = [1, 32], strides = [1, 1]} : vector<1x128xf32> to vector<1x32xf32>
    %461 = arith.negf %460 : vector<1x32xf32>
    %462 = math.exp %461 : vector<1x32xf32>
    %cst_105 = arith.constant 1.000000e+00 : f32
    %463 = vector.broadcast %cst_105 : f32 to vector<1x32xf32>
    %464 = arith.addf %463, %462 : vector<1x32xf32>
    %465 = arith.divf %463, %464 : vector<1x32xf32>
    %466 = arith.mulf %457, %405 : vector<1x32xf32>
    %467 = arith.mulf %451, %459 : vector<1x32xf32>
    %468 = arith.addf %466, %467 : vector<1x32xf32>
    %469 = math.tanh %468 : vector<1x32xf32>
    %470 = arith.mulf %465, %469 : vector<1x32xf32>
    %c0_106 = arith.constant 0 : index
    %471 = arith.index_cast %c6_i32 : i32 to index
    %c0_107 = arith.constant 0 : index
    %472 = vector.load %arg12[%c0_106, %471, %c0_107] : memref<1x8x32xf32, #tpu.memory_space<vmem>>, vector<1x1x32xf32>
    %473 = vector.shape_cast %472 : vector<1x1x32xf32> to vector<1x32xf32>
    %474 = vector.shape_cast %470 : vector<1x32xf32> to vector<1x1x32xf32>
    tpu.vector_store %arg12[%c0_106, %471, %c0_107], %474 {strides = array<i32>} : memref<1x8x32xf32, #tpu.memory_space<vmem>>, vector<1x1x32xf32>,
    %c7_i32 = arith.constant 7 : i32
    %475 = arith.index_cast %c7_i32 : i32 to index
    %c0_108 = arith.constant 0 : index
    %476 = vector.load %arg14[%475, %c0_108] : memref<8x128xf32, #tpu.memory_space<vmem>>, vector<1x128xf32>
    %477 = arith.truncf %441 : vector<1x32xf32> to vector<1x32xbf16>
    %cst_109 = arith.constant dense<0.000000e+00> : vector<1x128xf32>
    %478 = tpu.matmul %477, %31, %cst_109 {dimension_numbers = #tpu.dot_dimension_numbers<[1], [0], [0], [1], [0, 0, 1, 1], [], []>} : vector<1x32xbf16>, vector<32x128xbf16>, vector<1x128xf32> -> vector<1x128xf32>
    %479 = arith.addf %476, %478 : vector<1x128xf32>
    %480 = vector.extract_strided_slice %479 {offsets = [0, 0], sizes = [1, 32], strides = [1, 1]} : vector<1x128xf32> to vector<1x32xf32>
    %481 = arith.negf %480 : vector<1x32xf32>
    %482 = math.exp %481 : vector<1x32xf32>
    %cst_110 = arith.constant 1.000000e+00 : f32
    %483 = vector.broadcast %cst_110 : f32 to vector<1x32xf32>
    %484 = arith.addf %483, %482 : vector<1x32xf32>
    %485 = arith.divf %483, %484 : vector<1x32xf32>
    %486 = vector.extract_strided_slice %479 {offsets = [0, 32], sizes = [1, 32], strides = [1, 1]} : vector<1x128xf32> to vector<1x32xf32>
    %487 = arith.negf %486 : vector<1x32xf32>
    %488 = math.exp %487 : vector<1x32xf32>
    %cst_111 = arith.constant 1.000000e+00 : f32
    %489 = vector.broadcast %cst_111 : f32 to vector<1x32xf32>
    %490 = arith.addf %489, %488 : vector<1x32xf32>
    %491 = arith.divf %489, %490 : vector<1x32xf32>
    %492 = vector.extract_strided_slice %479 {offsets = [0, 64], sizes = [1, 32], strides = [1, 1]} : vector<1x128xf32> to vector<1x32xf32>
    %493 = math.tanh %492 : vector<1x32xf32>
    %494 = vector.extract_strided_slice %479 {offsets = [0, 96], sizes = [1, 32], strides = [1, 1]} : vector<1x128xf32> to vector<1x32xf32>
    %495 = arith.negf %494 : vector<1x32xf32>
    %496 = math.exp %495 : vector<1x32xf32>
    %cst_112 = arith.constant 1.000000e+00 : f32
    %497 = vector.broadcast %cst_112 : f32 to vector<1x32xf32>
    %498 = arith.addf %497, %496 : vector<1x32xf32>
    %499 = arith.divf %497, %498 : vector<1x32xf32>
    %500 = arith.mulf %491, %439 : vector<1x32xf32>
    %501 = arith.mulf %485, %493 : vector<1x32xf32>
    %502 = arith.addf %500, %501 : vector<1x32xf32>
    %503 = math.tanh %502 : vector<1x32xf32>
    %504 = arith.mulf %499, %503 : vector<1x32xf32>
    %505 = tpu.concatenate %504, %470 in 1 : vector<1x32xf32>, vector<1x32xf32> -> vector<1x64xf32>
    %506 = arith.truncf %505 : vector<1x64xf32> to vector<1x64xbf16>
    %cst_113 = arith.constant dense<0.000000e+00> : vector<1x128xf32>
    %507 = tpu.matmul %506, %32, %cst_113 {dimension_numbers = #tpu.dot_dimension_numbers<[1], [0], [0], [1], [0, 0, 1, 1], [], []>} : vector<1x64xbf16>, vector<64x128xbf16>, vector<1x128xf32> -> vector<1x128xf32>
    %508 = arith.addf %507, %33 : vector<1x128xf32>
    %509 = vector.extract_strided_slice %508 {offsets = [0, 0], sizes = [1, 32], strides = [1, 1]} : vector<1x128xf32> to vector<1x32xf32>
    %510 = arith.negf %509 : vector<1x32xf32>
    %511 = math.exp %510 : vector<1x32xf32>
    %cst_114 = arith.constant 1.000000e+00 : f32
    %512 = vector.broadcast %cst_114 : f32 to vector<1x32xf32>
    %513 = arith.addf %512, %511 : vector<1x32xf32>
    %514 = arith.divf %512, %513 : vector<1x32xf32>
    %515 = vector.extract_strided_slice %508 {offsets = [0, 32], sizes = [1, 32], strides = [1, 1]} : vector<1x128xf32> to vector<1x32xf32>
    %516 = arith.negf %515 : vector<1x32xf32>
    %517 = math.exp %516 : vector<1x32xf32>
    %cst_115 = arith.constant 1.000000e+00 : f32
    %518 = vector.broadcast %cst_115 : f32 to vector<1x32xf32>
    %519 = arith.addf %518, %517 : vector<1x32xf32>
    %520 = arith.divf %518, %519 : vector<1x32xf32>
    %521 = vector.extract_strided_slice %508 {offsets = [0, 64], sizes = [1, 32], strides = [1, 1]} : vector<1x128xf32> to vector<1x32xf32>
    %522 = math.tanh %521 : vector<1x32xf32>
    %523 = vector.extract_strided_slice %508 {offsets = [0, 96], sizes = [1, 32], strides = [1, 1]} : vector<1x128xf32> to vector<1x32xf32>
    %524 = arith.negf %523 : vector<1x32xf32>
    %525 = math.exp %524 : vector<1x32xf32>
    %cst_116 = arith.constant 1.000000e+00 : f32
    %526 = vector.broadcast %cst_116 : f32 to vector<1x32xf32>
    %527 = arith.addf %526, %525 : vector<1x32xf32>
    %528 = arith.divf %526, %527 : vector<1x32xf32>
    %529 = arith.mulf %520, %468 : vector<1x32xf32>
    %530 = arith.mulf %514, %522 : vector<1x32xf32>
    %531 = arith.addf %529, %530 : vector<1x32xf32>
    %532 = math.tanh %531 : vector<1x32xf32>
    %533 = arith.mulf %528, %532 : vector<1x32xf32>
    %c0_117 = arith.constant 0 : index
    %534 = arith.index_cast %c7_i32 : i32 to index
    %c0_118 = arith.constant 0 : index
    %535 = vector.load %arg12[%c0_117, %534, %c0_118] : memref<1x8x32xf32, #tpu.memory_space<vmem>>, vector<1x1x32xf32>
    %536 = vector.shape_cast %535 : vector<1x1x32xf32> to vector<1x32xf32>
    %537 = vector.shape_cast %533 : vector<1x32xf32> to vector<1x1x32xf32>
    tpu.vector_store %arg12[%c0_117, %534, %c0_118], %537 {strides = array<i32>} : memref<1x8x32xf32, #tpu.memory_space<vmem>>, vector<1x1x32xf32>,
    %c8_i32 = arith.constant 8 : i32
    return
  }
  func.func @transform_0(%arg0: i32) -> (i32, i32, i32) {
    %c0_i32 = arith.constant 0 : i32
    %c0_i32_0 = arith.constant 0 : i32
    %c0_i32_1 = arith.constant 0 : i32
    return %arg0, %c0_i32, %c0_i32_0 : i32, i32, i32
  }
  func.func @transform_1(%arg0: i32) -> (i32, i32, i32) {
    %c0_i32 = arith.constant 0 : i32
    %c0_i32_0 = arith.constant 0 : i32
    %c0_i32_1 = arith.constant 0 : i32
    return %arg0, %c0_i32, %c0_i32_0 : i32, i32, i32
  }
  func.func @transform_2(%arg0: i32) -> (i32, i32) {
    %c0_i32 = arith.constant 0 : i32
    %c0_i32_0 = arith.constant 0 : i32
    %c0_i32_1 = arith.constant 0 : i32
    return %c0_i32, %c0_i32_0 : i32, i32
  }
  func.func @transform_3(%arg0: i32) -> (i32, i32) {
    %c0_i32 = arith.constant 0 : i32
    %c0_i32_0 = arith.constant 0 : i32
    %c0_i32_1 = arith.constant 0 : i32
    return %c0_i32, %c0_i32_0 : i32, i32
  }
  func.func @transform_4(%arg0: i32) -> (i32, i32) {
    %c0_i32 = arith.constant 0 : i32
    %c0_i32_0 = arith.constant 0 : i32
    %c0_i32_1 = arith.constant 0 : i32
    return %c0_i32, %c0_i32_0 : i32, i32
  }
  func.func @transform_5(%arg0: i32) -> (i32, i32) {
    %c0_i32 = arith.constant 0 : i32
    %c0_i32_0 = arith.constant 0 : i32
    %c0_i32_1 = arith.constant 0 : i32
    return %c0_i32, %c0_i32_0 : i32, i32
  }
  func.func @transform_6(%arg0: i32) -> (i32, i32) {
    %c0_i32 = arith.constant 0 : i32
    %c0_i32_0 = arith.constant 0 : i32
    %c0_i32_1 = arith.constant 0 : i32
    return %c0_i32, %c0_i32_0 : i32, i32
  }
  func.func @transform_7(%arg0: i32) -> (i32, i32) {
    %c0_i32 = arith.constant 0 : i32
    %c0_i32_0 = arith.constant 0 : i32
    %c0_i32_1 = arith.constant 0 : i32
    return %c0_i32, %c0_i32_0 : i32, i32
  }
  func.func @transform_8(%arg0: i32) -> (i32, i32) {
    %c0_i32 = arith.constant 0 : i32
    %c0_i32_0 = arith.constant 0 : i32
    %c0_i32_1 = arith.constant 0 : i32
    return %c0_i32, %c0_i32_0 : i32, i32
  }
  func.func @transform_9(%arg0: i32) -> (i32, i32) {
    %c0_i32 = arith.constant 0 : i32
    %c0_i32_0 = arith.constant 0 : i32
    %c0_i32_1 = arith.constant 0 : i32
    return %c0_i32, %c0_i32_0 : i32, i32
  }
  func.func @transform_10(%arg0: i32) -> (i32, i32) {
    %c0_i32 = arith.constant 0 : i32
    %c0_i32_0 = arith.constant 0 : i32
    %c0_i32_1 = arith.constant 0 : i32
    return %c0_i32, %c0_i32_0 : i32, i32
  }
  func.func @transform_11(%arg0: i32) -> (i32, i32, i32) {
    %c0_i32 = arith.constant 0 : i32
    %c0_i32_0 = arith.constant 0 : i32
    %c0_i32_1 = arith.constant 0 : i32
    return %arg0, %c0_i32, %c0_i32_0 : i32, i32, i32
  }
  func.func @transform_12(%arg0: i32) -> (i32, i32, i32) {
    %c0_i32 = arith.constant 0 : i32
    %c0_i32_0 = arith.constant 0 : i32
    %c0_i32_1 = arith.constant 0 : i32
    return %arg0, %c0_i32, %c0_i32_0 : i32, i32, i32
  }
}

</mosaic_0001>

<llo_original>
// kernel: tpu_custom_call.1
$region0: #{tpu_custom_call.1}
  #allocation0 [shape = 'u32[]', space=smem, size = 0x4, offset = 0x4, fixed_abs, tag = 'smem constant byte address 0x4 - core index']
  #allocation1 [shape = 'u32[144,128]{1,0:T(1,128)}', space=vmem, size = 0x12000, scoped, tag = 'internal scratch']
  #allocation2 [shape = 'f32[8,128]{1,0:T(8,128)}', space=vmem, size = 0x1000, scoped, tag = 'scratch operand']
  %s0 = inlined_call_operand.vmem [shape: f32[2,5,64], index: 0, kind: input, shape index: {}]
  %s1 = inlined_call_operand.hbm [shape: f32[2,8,64], index: 1, kind: input, shape index: {}]
  %s2 = inlined_call_operand.vmem [shape: bf16[64,64], index: 2, kind: input, shape index: {}]
  %s3 = inlined_call_operand.hbm [shape: f32[1,64], index: 3, kind: input, shape index: {}]
  %s4 = inlined_call_operand.vmem [shape: bf16[64,32], index: 4, kind: input, shape index: {}]
  %s5 = inlined_call_operand.hbm [shape: f32[1,32], index: 5, kind: input, shape index: {}]
  %s6 = inlined_call_operand.vmem [shape: bf16[32,128], index: 6, kind: input, shape index: {}]
  %s7 = inlined_call_operand.vmem [shape: f32[1,128], index: 7, kind: input, shape index: {}]
  %s8 = inlined_call_operand.hbm [shape: bf16[32,128], index: 8, kind: input, shape index: {}]
  %s9 = inlined_call_operand.vmem [shape: bf16[64,128], index: 9, kind: input, shape index: {}]
  %s10 = inlined_call_operand.vmem [shape: f32[1,128], index: 10, kind: input, shape index: {}]
  %s11 = inlined_call_operand.hbm [shape: f32[2,8,32], index: 11, kind: output, shape index: {0}]
  %s12 = inlined_call_operand.hbm [shape: f32[2,1,32], index: 12, kind: output, shape index: {1}]
  %13 = xla_tuple %s11, %s12
  %s14 = sld [smem:[#allocation0]]
  $region101: #{tpu_custom_call.1} parent=0
    _
  %s16 = ssub.s32 1, %s14
  %s17 = scalar_select 0, %s16, %s14
  $region1: #{tpu_custom_call.1} parent=0
    #allocation3 [shape = 'u8[8192]{0}', space=vmem, size = 0x2000, scoped, tag = 'input window, operand 1']
    #allocation4 [shape = 's32[2]{0}', space=sflag, size = 0x8, scoped, tag = 'scoped memory for tpu_custom_call.1']
    #allocation5 [shape = 's32[2]{0}', space=sflag, size = 0x8, scoped, tag = 'scoped memory for tpu_custom_call.1']
    #allocation6 [shape = 'u8[512]{0}', space=vmem, size = 0x400, scoped, tag = 'input window, operand 3, single buffered']
    #allocation7 [shape = 's32[1]{0}', space=sflag, size = 0x4, scoped, tag = 'scoped memory for tpu_custom_call.1']
    #allocation8 [shape = 'u8[512]{0}', space=vmem, size = 0x400, scoped, tag = 'input window, operand 5, single buffered']
    #allocation9 [shape = 'u8[8192]{0}', space=vmem, size = 0x2000, scoped, tag = 'input window, operand 8, single buffered']
    #allocation10 [shape = 's32[1]{0}', space=sflag, size = 0x4, scoped, tag = 'scoped memory for tpu_custom_call.1']
    #allocation11 [shape = 'u8[8192]{0}', space=vmem, size = 0x2000, scoped, tag = 'output window, operand 0']
    #allocation12 [shape = 'u8[1024]{0}', space=vmem, size = 0x400, scoped, tag = 'output window, operand 1']
    #allocation13 [shape = 's32[2]{0}', space=sflag, size = 0x8, scoped, tag = 'scoped memory for tpu_custom_call.1']
    %18 = vsyncpa [#allocation4], 0
    %s19 = scalar_lea.sflag [#allocation4], 1
    %20 = vsyncpa %s19, 0
    %21 = vsyncpa [#allocation7], 0
    %22 = vsyncpa [#allocation10], 0
    %23 = vsyncpa [#allocation5], 0
    %s24 = scalar_lea.sflag [#allocation5], 1
    %25 = vsyncpa %s24, 0
    %26 = vsyncpa [#allocation13], 0
    %s27 = scalar_lea.sflag [#allocation13], 1
    %28 = vsyncpa %s27, 0
    loop: start=0, step=1, limit=4
    $region2: #{tpu_custom_call.1} parent=1 // loop_pre_header
      _
    $region3: #{tpu_custom_call.1} parent=1 // loop_header
      %s30 = sphi 0, %s34
      %p31 = scmp.ge.s32.totalorder %s30, 4
      %s40 = sphi 0, %s42
      %s43 = sphi 0, %s40
      %s44 = sphi 0, %s43
      %s60 = sphi 0, %s44
      %s66 = sphi 0, %s68
      %s69 = sphi 0, %s66
      %s70 = sphi 0, %s69
      %s86 = sphi 0, %s70
      %s90 = sphi 0, %s90
      %s92 = sphi 0, %s90
      %s93 = sphi 0, %s92
      %s107 = sphi 0, %s93
      %s111 = sphi 0, %s111
      %s113 = sphi 0, %s111
      %s114 = sphi 0, %s113
      %s128 = sphi 0, %s114
      %s132 = sphi 0, %s132
      %s134 = sphi 0, %s132
      %s135 = sphi 0, %s134
      %s149 = sphi 0, %s135
      %s153 = sphi 0, %s153
      %s155 = sphi 0, %s153
      %s156 = sphi 0, %s155
      %s170 = sphi 0, %s156
      %s174 = sphi 0, %s174
      %s176 = sphi 0, %s174
      %s177 = sphi 0, %s176
      %s191 = sphi 0, %s177
      %s195 = sphi 0, %s195
      %s197 = sphi 0, %s195
      %s198 = sphi 0, %s197
      %s212 = sphi 0, %s198
      %s216 = sphi 0, %s216
      %s218 = sphi 0, %s216
      %s219 = sphi 0, %s218
      %s233 = sphi 0, %s219
      %s237 = sphi 0, %s237
      %s239 = sphi 0, %s237
      %s240 = sphi 0, %s239
      %s254 = sphi 0, %s240
      %s258 = sphi 0, %s258
      %s260 = sphi 0, %s258
      %s261 = sphi 0, %s260
      %s275 = sphi 0, %s261
      %s281 = sphi 0, %s283
      %s284 = sphi 0, %s281
      %s285 = sphi 0, %s284
      %s301 = sphi 0, %s285
      %s307 = sphi 0, %s309
      %s310 = sphi 0, %s307
      %s311 = sphi 0, %s310
      %s327 = sphi 0, %s311
    $region4: #{tpu_custom_call.1} parent=1 // loop_header_branch
      %33 = sbr.rel (%p31) target = $region8
    $region5: #{tpu_custom_call.1} parent=1 // loop_body
      %s35 = ssub.s32 %s30, 1
      %s36 = ssub.s32 %s30, 2
      %s37 = sadd.s32 %s30, 1
      %s38 = ssub.s32 %s30, %s37
      %p39 = scmp.eq.s32.totalorder %s38, 0
      %s41 = sadd.s32 %s40, 1
      %s42 = scalar_select %p39, %s40, %s41
      %p45 = pneg %p39
      %p46 = scmp.eq.s32.totalorder %s30, 1
      %p47 = por %p45, %p46
      %p48 = scmp.ne.s32.totalorder %s40, %s43
      %p49 = scmp.eq.s32.totalorder %s30, 0
      %p50 = por %p48, %p49
      %p51 = scmp.ne.s32.totalorder %s40, %s43
      %p52 = scmp.eq.s32.totalorder %s35, 1
      %p53 = por %p51, %p52
      %p54 = scmp.ne.s32.totalorder %s43, %s44
      %p55 = scmp.eq.s32.totalorder %s35, 0
      %p56 = por %p54, %p55
      %p57 = scmp.ne.s32.totalorder %s43, %s44
      %p58 = scmp.eq.s32.totalorder %s36, 1
      %p59 = por %p57, %p58
      %p61 = scmp.ne.s32.totalorder %s44, %s60
      %p62 = scmp.eq.s32.totalorder %s36, 0
      %p63 = por %p61, %p62
      %s64 = ssub.s32 %s30, %s37
      %p65 = scmp.eq.s32.totalorder %s64, 0
      %s67 = sadd.s32 %s66, 1
      %s68 = scalar_select %p65, %s66, %s67
      %p71 = pneg %p65
      %p72 = scmp.eq.s32.totalorder %s30, 1
      %p73 = por %p71, %p72
      %p74 = scmp.ne.s32.totalorder %s66, %s69
      %p75 = scmp.eq.s32.totalorder %s30, 0
      %p76 = por %p74, %p75
      %p77 = scmp.ne.s32.totalorder %s66, %s69
      %p78 = scmp.eq.s32.totalorder %s35, 1
      %p79 = por %p77, %p78
      %p80 = scmp.ne.s32.totalorder %s69, %s70
      %p81 = scmp.eq.s32.totalorder %s35, 0
      %p82 = por %p80, %p81
      %p83 = scmp.ne.s32.totalorder %s69, %s70
      %p84 = scmp.eq.s32.totalorder %s36, 1
      %p85 = por %p83, %p84
      %p87 = scmp.ne.s32.totalorder %s70, %s86
      %p88 = scmp.eq.s32.totalorder %s36, 0
      %p89 = por %p87, %p88
      %s91 = sadd.s32 %s90, 1
      %p94 = scmp.eq.s32.totalorder %s30, 1
      %p95 = scmp.ne.s32.totalorder %s90, %s92
      %p96 = scmp.eq.s32.totalorder %s30, 0
      %p97 = por %p95, %p96
      %p98 = scmp.ne.s32.totalorder %s90, %s92
      %p99 = scmp.eq.s32.totalorder %s35, 1
      %p100 = por %p98, %p99
      %p101 = scmp.ne.s32.totalorder %s92, %s93
      %p102 = scmp.eq.s32.totalorder %s35, 0
      %p103 = por %p101, %p102
      %p104 = scmp.ne.s32.totalorder %s92, %s93
      %p105 = scmp.eq.s32.totalorder %s36, 1
      %p106 = por %p104, %p105
      %p108 = scmp.ne.s32.totalorder %s93, %s107
      %p109 = scmp.eq.s32.totalorder %s36, 0
      %p110 = por %p108, %p109
      %s112 = sadd.s32 %s111, 1
      %p115 = scmp.eq.s32.totalorder %s30, 1
      %p116 = scmp.ne.s32.totalorder %s111, %s113
      %p117 = scmp.eq.s32.totalorder %s30, 0
      %p118 = por %p116, %p117
      %p119 = scmp.ne.s32.totalorder %s111, %s113
      %p120 = scmp.eq.s32.totalorder %s35, 1
      %p121 = por %p119, %p120
      %p122 = scmp.ne.s32.totalorder %s113, %s114
      %p123 = scmp.eq.s32.totalorder %s35, 0
      %p124 = por %p122, %p123
      %p125 = scmp.ne.s32.totalorder %s113, %s114
      %p126 = scmp.eq.s32.totalorder %s36, 1
      %p127 = por %p125, %p126
      %p129 = scmp.ne.s32.totalorder %s114, %s128
      %p130 = scmp.eq.s32.totalorder %s36, 0
      %p131 = por %p129, %p130
      %s133 = sadd.s32 %s132, 1
      %p136 = scmp.eq.s32.totalorder %s30, 1
      %p137 = scmp.ne.s32.totalorder %s132, %s134
      %p138 = scmp.eq.s32.totalorder %s30, 0
      %p139 = por %p137, %p138
      %p140 = scmp.ne.s32.totalorder %s132, %s134
      %p141 = scmp.eq.s32.totalorder %s35, 1
      %p142 = por %p140, %p141
      %p143 = scmp.ne.s32.totalorder %s134, %s135
      %p144 = scmp.eq.s32.totalorder %s35, 0
      %p145 = por %p143, %p144
      %p146 = scmp.ne.s32.totalorder %s134, %s135
      %p147 = scmp.eq.s32.totalorder %s36, 1
      %p148 = por %p146, %p147
      %p150 = scmp.ne.s32.totalorder %s135, %s149
      %p151 = scmp.eq.s32.totalorder %s36, 0
      %p152 = por %p150, %p151
      %s154 = sadd.s32 %s153, 1
      %p157 = scmp.eq.s32.totalorder %s30, 1
      %p158 = scmp.ne.s32.totalorder %s153, %s155
      %p159 = scmp.eq.s32.totalorder %s30, 0
      %p160 = por %p158, %p159
      %p161 = scmp.ne.s32.totalorder %s153, %s155
      %p162 = scmp.eq.s32.totalorder %s35, 1
      %p163 = por %p161, %p162
      %p164 = scmp.ne.s32.totalorder %s155, %s156
      %p165 = scmp.eq.s32.totalorder %s35, 0
      %p166 = por %p164, %p165
      %p167 = scmp.ne.s32.totalorder %s155, %s156
      %p168 = scmp.eq.s32.totalorder %s36, 1
      %p169 = por %p167, %p168
      %p171 = scmp.ne.s32.totalorder %s156, %s170
      %p172 = scmp.eq.s32.totalorder %s36, 0
      %p173 = por %p171, %p172
      %s175 = sadd.s32 %s174, 1
      %p178 = scmp.eq.s32.totalorder %s30, 1
      %p179 = scmp.ne.s32.totalorder %s174, %s176
      %p180 = scmp.eq.s32.totalorder %s30, 0
      %p181 = por %p179, %p180
      %p182 = scmp.ne.s32.totalorder %s174, %s176
      %p183 = scmp.eq.s32.totalorder %s35, 1
      %p184 = por %p182, %p183
      %p185 = scmp.ne.s32.totalorder %s176, %s177
      %p186 = scmp.eq.s32.totalorder %s35, 0
      %p187 = por %p185, %p186
      %p188 = scmp.ne.s32.totalorder %s176, %s177
      %p189 = scmp.eq.s32.totalorder %s36, 1
      %p190 = por %p188, %p189
      %p192 = scmp.ne.s32.totalorder %s177, %s191
      %p193 = scmp.eq.s32.totalorder %s36, 0
      %p194 = por %p192, %p193
      %s196 = sadd.s32 %s195, 1
      %p199 = scmp.eq.s32.totalorder %s30, 1
      %p200 = scmp.ne.s32.totalorder %s195, %s197
      %p201 = scmp.eq.s32.totalorder %s30, 0
      %p202 = por %p200, %p201
      %p203 = scmp.ne.s32.totalorder %s195, %s197
      %p204 = scmp.eq.s32.totalorder %s35, 1
      %p205 = por %p203, %p204
      %p206 = scmp.ne.s32.totalorder %s197, %s198
      %p207 = scmp.eq.s32.totalorder %s35, 0
      %p208 = por %p206, %p207
      %p209 = scmp.ne.s32.totalorder %s197, %s198
      %p210 = scmp.eq.s32.totalorder %s36, 1
      %p211 = por %p209, %p210
      %p213 = scmp.ne.s32.totalorder %s198, %s212
      %p214 = scmp.eq.s32.totalorder %s36, 0
      %p215 = por %p213, %p214
      %s217 = sadd.s32 %s216, 1
      %p220 = scmp.eq.s32.totalorder %s30, 1
      %p221 = scmp.ne.s32.totalorder %s216, %s218
      %p222 = scmp.eq.s32.totalorder %s30, 0
      %p223 = por %p221, %p222
      %p224 = scmp.ne.s32.totalorder %s216, %s218
      %p225 = scmp.eq.s32.totalorder %s35, 1
      %p226 = por %p224, %p225
      %p227 = scmp.ne.s32.totalorder %s218, %s219
      %p228 = scmp.eq.s32.totalorder %s35, 0
      %p229 = por %p227, %p228
      %p230 = scmp.ne.s32.totalorder %s218, %s219
      %p231 = scmp.eq.s32.totalorder %s36, 1
      %p232 = por %p230, %p231
      %p234 = scmp.ne.s32.totalorder %s219, %s233
      %p235 = scmp.eq.s32.totalorder %s36, 0
      %p236 = por %p234, %p235
      %s238 = sadd.s32 %s237, 1
      %p241 = scmp.eq.s32.totalorder %s30, 1
      %p242 = scmp.ne.s32.totalorder %s237, %s239
      %p243 = scmp.eq.s32.totalorder %s30, 0
      %p244 = por %p242, %p243
      %p245 = scmp.ne.s32.totalorder %s237, %s239
      %p246 = scmp.eq.s32.totalorder %s35, 1
      %p247 = por %p245, %p246
      %p248 = scmp.ne.s32.totalorder %s239, %s240
      %p249 = scmp.eq.s32.totalorder %s35, 0
      %p250 = por %p248, %p249
      %p251 = scmp.ne.s32.totalorder %s239, %s240
      %p252 = scmp.eq.s32.totalorder %s36, 1
      %p253 = por %p251, %p252
      %p255 = scmp.ne.s32.totalorder %s240, %s254
      %p256 = scmp.eq.s32.totalorder %s36, 0
      %p257 = por %p255, %p256
      %s259 = sadd.s32 %s258, 1
      %p262 = scmp.eq.s32.totalorder %s30, 1
      %p263 = scmp.ne.s32.totalorder %s258, %s260
      %p264 = scmp.eq.s32.totalorder %s30, 0
      %p265 = por %p263, %p264
      %p266 = scmp.ne.s32.totalorder %s258, %s260
      %p267 = scmp.eq.s32.totalorder %s35, 1
      %p268 = por %p266, %p267
      %p269 = scmp.ne.s32.totalorder %s260, %s261
      %p270 = scmp.eq.s32.totalorder %s35, 0
      %p271 = por %p269, %p270
      %p272 = scmp.ne.s32.totalorder %s260, %s261
      %p273 = scmp.eq.s32.totalorder %s36, 1
      %p274 = por %p272, %p273
      %p276 = scmp.ne.s32.totalorder %s261, %s275
      %p277 = scmp.eq.s32.totalorder %s36, 0
      %p278 = por %p276, %p277
      %s279 = ssub.s32 %s30, %s37
      %p280 = scmp.eq.s32.totalorder %s279, 0
      %s282 = sadd.s32 %s281, 1
      %s283 = scalar_select %p280, %s281, %s282
      %p286 = pneg %p280
      %p287 = scmp.eq.s32.totalorder %s30, 1
      %p288 = por %p286, %p287
      %p289 = scmp.ne.s32.totalorder %s281, %s284
      %p290 = scmp.eq.s32.totalorder %s30, 0
      %p291 = por %p289, %p290
      %p292 = scmp.ne.s32.totalorder %s281, %s284
      %p293 = scmp.eq.s32.totalorder %s35, 1
      %p294 = por %p292, %p293
      %p295 = scmp.ne.s32.totalorder %s284, %s285
      %p296 = scmp.eq.s32.totalorder %s35, 0
      %p297 = por %p295, %p296
      %p298 = scmp.ne.s32.totalorder %s284, %s285
      %p299 = scmp.eq.s32.totalorder %s36, 1
      %p300 = por %p298, %p299
      %p302 = scmp.ne.s32.totalorder %s285, %s301
      %p303 = scmp.eq.s32.totalorder %s36, 0
      %p304 = por %p302, %p303
      %s305 = ssub.s32 %s30, %s37
      %p306 = scmp.eq.s32.totalorder %s305, 0
      %s308 = sadd.s32 %s307, 1
      %s309 = scalar_select %p306, %s307, %s308
      %p312 = pneg %p306
      %p313 = scmp.eq.s32.totalorder %s30, 1
      %p314 = por %p312, %p313
      %p315 = scmp.ne.s32.totalorder %s307, %s310
      %p316 = scmp.eq.s32.totalorder %s30, 0
      %p317 = por %p315, %p316
      %p318 = scmp.ne.s32.totalorder %s307, %s310
      %p319 = scmp.eq.s32.totalorder %s35, 1
      %p320 = por %p318, %p319
      %p321 = scmp.ne.s32.totalorder %s310, %s311
      %p322 = scmp.eq.s32.totalorder %s35, 0
      %p323 = por %p321, %p322
      %p324 = scmp.ne.s32.totalorder %s310, %s311
      %p325 = scmp.eq.s32.totalorder %s36, 1
      %p326 = por %p324, %p325
      %p328 = scmp.ne.s32.totalorder %s311, %s327
      %p329 = scmp.eq.s32.totalorder %s36, 0
      %p330 = por %p328, %p329
      %p331 = scmp.le.s32.totalorder 1, %s30
      %p332 = scmp.lt.s32.totalorder %s30, 3
      %p333 = pnand %p331, %p332
      %p334 = pneg %p333
      // Predicated region
      $region9: #{tpu_custom_call.1} parent=5 // pred_check
        _
      $region10: #{tpu_custom_call.1} parent=5 // pred_check_branch
        %336 = sbr.rel (%p333) target = $region12
      $region11: #{tpu_custom_call.1} parent=5 // pred_region
        %s337 = ssub.s32 %s30, 1
        // Predicated region
        $region13: #{tpu_custom_call.1} parent=11 // pred_check
          %p338 = pneg %p103
        $region14: #{tpu_custom_call.1} parent=11 // pred_check_branch
          %340 = sbr.rel (%p338) target = $region16
        $region15: #{tpu_custom_call.1} parent=11 // pred_region
          _
        $region16: #{tpu_custom_call.1} parent=11 // pred_fallthru
          _
        // Predicated region
        $region17: #{tpu_custom_call.1} parent=11 // pred_check
          %p341 = pneg %p124
        $region18: #{tpu_custom_call.1} parent=11 // pred_check_branch
          %343 = sbr.rel (%p341) target = $region20
        $region19: #{tpu_custom_call.1} parent=11 // pred_region
          %s345 = ssub.s32 16, 16
          %346 = vsyncadd [#allocation7], %s345
          %s348 = sshll.u32 [#allocation6], 4
          %s349 = int_to_ptr.vmem [resolvable:$true] %s348
          %351 = dma.hbm_to_vmem [thread:$0]  %s3, 16, %s349, [#allocation7]
        $region20: #{tpu_custom_call.1} parent=11 // pred_fallthru
          _
        // Predicated region
        $region21: #{tpu_custom_call.1} parent=11 // pred_check
          %p352 = pneg %p145
        $region22: #{tpu_custom_call.1} parent=11 // pred_check_branch
          %354 = sbr.rel (%p352) target = $region24
        $region23: #{tpu_custom_call.1} parent=11 // pred_region
          _
        $region24: #{tpu_custom_call.1} parent=11 // pred_fallthru
          _
        // Predicated region
        $region25: #{tpu_custom_call.1} parent=11 // pred_check
          %p355 = pneg %p166
        $region26: #{tpu_custom_call.1} parent=11 // pred_check_branch
          %357 = sbr.rel (%p355) target = $region28
        $region27: #{tpu_custom_call.1} parent=11 // pred_region
          %s359 = ssub.s32 16, 16
          %360 = vsyncadd [#allocation7], %s359
          %s362 = sshll.u32 [#allocation8], 4
          %s363 = int_to_ptr.vmem [resolvable:$true] %s362
          %365 = dma.hbm_to_vmem [thread:$0]  %s5, 16, %s363, [#allocation7]
        $region28: #{tpu_custom_call.1} parent=11 // pred_fallthru
          _
        // Predicated region
        $region29: #{tpu_custom_call.1} parent=11 // pred_check
          %p366 = pneg %p187
        $region30: #{tpu_custom_call.1} parent=11 // pred_check_branch
          %368 = sbr.rel (%p366) target = $region32
        $region31: #{tpu_custom_call.1} parent=11 // pred_region
          _
        $region32: #{tpu_custom_call.1} parent=11 // pred_fallthru
          _
        // Predicated region
        $region33: #{tpu_custom_call.1} parent=11 // pred_check
          %p369 = pneg %p208
        $region34: #{tpu_custom_call.1} parent=11 // pred_check_branch
          %371 = sbr.rel (%p369) target = $region36
        $region35: #{tpu_custom_call.1} parent=11 // pred_region
          _
        $region36: #{tpu_custom_call.1} parent=11 // pred_fallthru
          _
        // Predicated region
        $region37: #{tpu_custom_call.1} parent=11 // pred_check
          %p372 = pneg %p229
        $region38: #{tpu_custom_call.1} parent=11 // pred_check_branch
          %374 = sbr.rel (%p372) target = $region40
        $region39: #{tpu_custom_call.1} parent=11 // pred_region
          %s376 = ssub.s32 256, 256
          %377 = vsyncadd [#allocation10], %s376
          %s378 = sshll.u32 [#allocation9], 4
          %s379 = int_to_ptr.vmem [resolvable:$true] %s378
          %384 = dma.hbm_to_vmem [thread:$0]  %s8, 256, %s379, [#allocation10], 64, 64, 4
        $region40: #{tpu_custom_call.1} parent=11 // pred_fallthru
          _
        // Predicated region
        $region41: #{tpu_custom_call.1} parent=11 // pred_check
          %p385 = pneg %p250
        $region42: #{tpu_custom_call.1} parent=11 // pred_check_branch
          %387 = sbr.rel (%p385) target = $region44
        $region43: #{tpu_custom_call.1} parent=11 // pred_region
          _
        $region44: #{tpu_custom_call.1} parent=11 // pred_fallthru
          _
        // Predicated region
        $region45: #{tpu_custom_call.1} parent=11 // pred_check
          %p388 = pneg %p271
        $region46: #{tpu_custom_call.1} parent=11 // pred_check_branch
          %390 = sbr.rel (%p388) target = $region48
        $region47: #{tpu_custom_call.1} parent=11 // pred_region
          _
        $region48: #{tpu_custom_call.1} parent=11 // pred_fallthru
          _
      $region12: #{tpu_custom_call.1} parent=5 // pred_fallthru
        _
      %p391 = scmp.lt.s32.totalorder %s30, 2
      // Predicated region
      $region49: #{tpu_custom_call.1} parent=5 // pred_check
        %p392 = pneg %p391
      $region50: #{tpu_custom_call.1} parent=5 // pred_check_branch
        %394 = sbr.rel (%p392) target = $region52
      $region51: #{tpu_custom_call.1} parent=5 // pred_region
        // Predicated region
        $region53: #{tpu_custom_call.1} parent=51 // pred_check
          %p395 = pneg %p50
        $region54: #{tpu_custom_call.1} parent=51 // pred_check_branch
          %397 = sbr.rel (%p395) target = $region56
        $region55: #{tpu_custom_call.1} parent=51 // pred_region
          %p398 = scmp.lt.s32.totalorder %s30, 1
          %s399 = scalar_select %p398, %s30, 1
          %s400 = smul.addr %s399, 8
          %s401 = scalar_lea.vmem %s0, %s400
        $region56: #{tpu_custom_call.1} parent=51 // pred_fallthru
          _
        // Predicated region
        $region57: #{tpu_custom_call.1} parent=51 // pred_check
          %p402 = pneg %p76
        $region58: #{tpu_custom_call.1} parent=51 // pred_check_branch
          %404 = sbr.rel (%p402) target = $region60
        $region59: #{tpu_custom_call.1} parent=51 // pred_region
          %s405 = sand.u32 %s66, 1
          %s406 = scalar_lea.sflag [#allocation4], %s405
          %s407 = sand.u32 %s66, 1
          %s408 = smul.addr %s407, 8
          %s409 = scalar_lea.vmem [#allocation3], %s408
          %s411 = ssub.s32 128, 128
          %412 = vsyncadd %s406, %s411
          %s413 = smul.addr %s30, 128
          %s414 = scalar_lea.hbm %s1, %s413
          %s416 = sshll.u32 %s409, 4
          %s417 = int_to_ptr.vmem [resolvable:$true] %s416
          %419 = dma.hbm_to_vmem [thread:$0]  %s414, 128, %s417, %s406
        $region60: #{tpu_custom_call.1} parent=51 // pred_fallthru
          _
      $region52: #{tpu_custom_call.1} parent=5 // pred_fallthru
        _
      %p420 = scmp.le.s32.totalorder 1, %s30
      %p421 = scmp.lt.s32.totalorder %s30, 3
      %p422 = pnand %p420, %p421
      %p423 = pneg %p422
      // Predicated region
      $region61: #{tpu_custom_call.1} parent=5 // pred_check
        _
      $region62: #{tpu_custom_call.1} parent=5 // pred_check_branch
        %425 = sbr.rel (%p422) target = $region64
      $region63: #{tpu_custom_call.1} parent=5 // pred_region
        %s426 = ssub.s32 %s30, 1
        %s427 = sand.u32 %s69, 1
        %s428 = scalar_lea.sflag [#allocation4], %s427
        %s429 = sand.u32 %s69, 1
        %s430 = smul.addr %s429, 8
        %s431 = scalar_lea.vmem [#allocation3], %s430
        // Predicated region
        $region65: #{tpu_custom_call.1} parent=63 // pred_check
          %p432 = pneg %p82
        $region66: #{tpu_custom_call.1} parent=63 // pred_check_branch
          %434 = sbr.rel (%p432) target = $region68
        $region67: #{tpu_custom_call.1} parent=63 // pred_region
          %435 = dma.done %s428, 128
        $region68: #{tpu_custom_call.1} parent=63 // pred_fallthru
          _
        // Predicated region
        $region69: #{tpu_custom_call.1} parent=63 // pred_check
          %p436 = pneg %p124
        $region70: #{tpu_custom_call.1} parent=63 // pred_check_branch
          %438 = sbr.rel (%p436) target = $region72
        $region71: #{tpu_custom_call.1} parent=63 // pred_region
          %439 = dma.done [#allocation7], 16
        $region72: #{tpu_custom_call.1} parent=63 // pred_fallthru
          _
        // Predicated region
        $region73: #{tpu_custom_call.1} parent=63 // pred_check
          %p440 = pneg %p166
        $region74: #{tpu_custom_call.1} parent=63 // pred_check_branch
          %442 = sbr.rel (%p440) target = $region76
        $region75: #{tpu_custom_call.1} parent=63 // pred_region
          %443 = dma.done [#allocation7], 16
        $region76: #{tpu_custom_call.1} parent=63 // pred_fallthru
          _
        // Predicated region
        $region77: #{tpu_custom_call.1} parent=63 // pred_check
          %p444 = pneg %p229
        $region78: #{tpu_custom_call.1} parent=63 // pred_check_branch
          %446 = sbr.rel (%p444) target = $region80
        $region79: #{tpu_custom_call.1} parent=63 // pred_region
          %447 = dma.done [#allocation10], 256
        $region80: #{tpu_custom_call.1} parent=63 // pred_fallthru
          _
        %p448 = scmp.lt.s32.totalorder %s35, 1
        %s449 = scalar_select %p448, %s35, 1
        %s450 = smul.addr %s449, 8
        %s451 = scalar_lea.vmem %s0, %s450
        %p452 = pneg %p56
        %p453 = pneg %p53
        %s454 = sand.u32 %s69, 1
        %s455 = scalar_lea.sflag [#allocation4], %s454
        %s456 = sand.u32 %s69, 1
        %s457 = smul.addr %s456, 8
        %s458 = scalar_lea.vmem [#allocation3], %s457
        %p459 = pneg %p82
        %p460 = pneg %p79
        %p461 = pneg %p103
        %p462 = pneg %p100
        %p463 = pneg %p124
        %p464 = pneg %p121
        %p465 = pneg %p145
        %p466 = pneg %p142
        %p467 = pneg %p166
        %p468 = pneg %p163
        %p469 = pneg %p187
        %p470 = pneg %p184
        %p471 = pneg %p208
        %p472 = pneg %p205
        %p473 = pneg %p229
        %p474 = pneg %p226
        %p475 = pneg %p250
        %p476 = pneg %p247
        %p477 = pneg %p271
        %p478 = pneg %p268
        %p479 = pneg %p297
        %p480 = pneg %p294
        %s481 = sand.u32 %s284, 1
        %s482 = scalar_lea.sflag [#allocation5], %s481
        %s483 = sand.u32 %s284, 1
        %s484 = smul.addr %s483, 8
        %s485 = scalar_lea.vmem [#allocation11], %s484
        %p486 = pneg %p323
        %p487 = pneg %p320
        %s488 = sand.u32 %s310, 1
        %s489 = scalar_lea.sflag [#allocation13], %s488
        %s490 = sand.u32 %s310, 1
        %s491 = scalar_lea.vmem [#allocation12], %s490
        %p492 = scmp.lt.s32.totalorder %s35, 1
        %s493 = scalar_select %p492, %s35, 1
        %s494 = smul.addr %s493, 8
        %s495 = scalar_lea.vmem %s0, %s494
        %v497 = vld [vmem:[%s495] sm:$0x1f]
        %v498 = vld [vmem:[%s2] sm:$0xf]
        %v499 = vld [vmem:[%s2 + $0x4] sm:$0xf]
        %v500 = vld [vmem:[%s2 + $0x8] sm:$0xf]
        %v501 = vld [vmem:[%s2 + $0xc] sm:$0xf]
        %v502 = vld [vmem:[%s2 + $0x10] sm:$0xf]
        %v503 = vld [vmem:[%s2 + $0x14] sm:$0xf]
        %v504 = vld [vmem:[%s2 + $0x18] sm:$0xf]
        %v505 = vld [vmem:[%s2 + $0x1c] sm:$0xf]
        %v506 = vpack.c.bf16 %v497, %v497
        %v507 = vld [vmem:[#allocation6] sm:$0x1]
        %v509 = vlaneseq
        %v510 = vshrl.u32 %v509, 7
        %v511 = vsub.s32 0, %v510
        %v512 = vrot.slane %v507, %v511
        %v522 = vunpack.c.l.b16 %v498
        %v523 = vunpack.c.l.b16 %v499
        %v524 = vunpack.c.l.b16 %v500
        %v525 = vunpack.c.l.b16 %v501
        %v526 = vunpack.c.l.b16 %v502
        %v527 = vunpack.c.l.b16 %v503
        %v528 = vunpack.c.l.b16 %v504
        %v529 = vunpack.c.l.b16 %v505
        %v530 = vpack.c.b16 %v523, %v522
        %v531 = vpack.c.b16 %v525, %v524
        %v532 = vpack.c.b16 %v527, %v526
        %v533 = vpack.c.b16 %v529, %v528
        %vm538 = vcmask 523264
        %v540 = vsel %vm538, %v506, 0
        %542 = vmatprep.subr.bf16.mxu0 0
        %543 = vmatpush1.bf16.msra.mxu0 %v530
        %544 = vmatprep.subr.bf16.mxu0 0
        %545 = vmatpush1.bf16.msra.mxu0 %v531
        %546 = vmatprep.subr.bf16.mxu0 0
        %547 = vmatpush1.bf16.msra.mxu0 %v532
        %548 = vmatprep.subr.bf16.mxu0 0
        %549 = vmatpush1.bf16.msra.mxu0 %v533
        %550 = vmatprep.subr.bf16.mxu0 0
        %551 = vmatpush1.bf16.msra.mxu0 0
        %552 = vmatprep.subr.bf16.mxu0 0
        %553 = vmatpush1.bf16.msra.mxu0 0
        %554 = vmatprep.subr.bf16.mxu0 0
        %555 = vmatpush1.bf16.msra.mxu0 0
        %556 = vmatprep.subr.bf16.mxu0 0
        %557 = vmatpush1.bf16.msra.mxu0 0
        %558 = vmatprep.subr.bf16.mxu0 0
        %559 = vmatpush1.bf16.msra.mxu0 0
        %560 = vmatprep.subr.bf16.mxu0 0
        %561 = vmatpush1.bf16.msra.mxu0 0
        %562 = vmatprep.subr.bf16.mxu0 0
        %563 = vmatpush1.bf16.msra.mxu0 0
        %564 = vmatprep.subr.bf16.mxu0 0
        %565 = vmatpush1.bf16.msra.mxu0 0
        %566 = vmatprep.subr.bf16.mxu0 0
        %567 = vmatpush1.bf16.msra.mxu0 0
        %568 = vmatprep.subr.bf16.mxu0 0
        %569 = vmatpush1.bf16.msra.mxu0 0
        %570 = vmatprep.subr.bf16.mxu0 0
        %571 = vmatpush1.bf16.msra.mxu0 0
        %572 = vmatprep.subr.bf16.mxu0 0
        %573 = vmatpush1.bf16.msra.mxu0 0
        %574 = vmatprep.mubr.bf16.mxu0 0
        %575 = vmatmul.mubr.bf16.gmra.mrb[0].mxu0 %v540
        %v576 = vpop.f32.mrb[0].mxu0
        %v577 = vadd.f32 %v512, %v576
        %v578 = vpop.f32.mrb[0].mxu0
        %v579 = vpop.f32.mrb[0].mxu0
        %v580 = vpop.f32.mrb[0].mxu0
        %581 = vdwg.mxu0
        %v582 = vtanh.pop %v577
        %vm583 = vcmask 520192
        %v584 = vsel %vm583, %v582, -inf
        %v585 = vrot.slane %v584, 4
        %v586 = vmax.f32 %v584, %v585
        %v587 = vrot.slane %v586, 2
        %v588 = vmax.f32 %v586, %v587
        %v589 = vrot.slane %v588, 1
        %v590 = vmax.f32 %v588, %v589
        %592 = vrot.lane.b32.xlu0 %v590, 96
        %v593 = vpop.permute.xlu0 %592
        %vm595 = vcmask 253952
        %596 = vst.msk [vmem:[%s491] sm:$0x1] %vm595, %v593
        %v597 = vld [vmem:[%s431] sm:$0xff]
        %v598 = vld [vmem:[%s4] sm:$0xf]
        %v599 = vld [vmem:[%s4 + $0x4] sm:$0xf]
        %v600 = vld [vmem:[%s4 + $0x8] sm:$0xf]
        %v601 = vld [vmem:[%s4 + $0xc] sm:$0xf]
        %v602 = vld [vmem:[%s4 + $0x10] sm:$0xf]
        %v603 = vld [vmem:[%s4 + $0x14] sm:$0xf]
        %v604 = vld [vmem:[%s4 + $0x18] sm:$0xf]
        %v605 = vld [vmem:[%s4 + $0x1c] sm:$0xf]
        %v606 = vpack.c.bf16 %v597, %v597
        %v607 = vld [vmem:[#allocation8] sm:$0x1]
        %v609 = vlaneseq
        %v610 = vshrl.u32 %v609, 7
        %v611 = vsub.s32 0, %v610
        %v612 = vrot.slane %v607, %v611
        %v622 = vunpack.c.l.b16 %v598
        %v623 = vunpack.c.l.b16 %v599
        %v624 = vunpack.c.l.b16 %v600
        %v625 = vunpack.c.l.b16 %v601
        %v626 = vunpack.c.l.b16 %v602
        %v627 = vunpack.c.l.b16 %v603
        %v628 = vunpack.c.l.b16 %v604
        %v629 = vunpack.c.l.b16 %v605
        %v630 = vpack.c.b16 %v623, %v622
        %v631 = vpack.c.b16 %v625, %v624
        %v632 = vpack.c.b16 %v627, %v626
        %v633 = vpack.c.b16 %v629, %v628
        %v639 = vsel %vm538, %v606, 0
        %641 = vmatprep.subr.bf16.mxu0 0
        %642 = vmatpush1.bf16.msra.mxu0 %v630
        %643 = vmatprep.subr.bf16.mxu0 0
        %644 = vmatpush1.bf16.msra.mxu0 %v631
        %645 = vmatprep.subr.bf16.mxu0 0
        %646 = vmatpush1.bf16.msra.mxu0 %v632
        %647 = vmatprep.subr.bf16.mxu0 0
        %648 = vmatpush1.bf16.msra.mxu0 %v633
        %649 = vmatprep.subr.bf16.mxu0 0
        %650 = vmatpush1.bf16.msra.mxu0 0
        %651 = vmatprep.subr.bf16.mxu0 0
        %652 = vmatpush1.bf16.msra.mxu0 0
        %653 = vmatprep.subr.bf16.mxu0 0
        %654 = vmatpush1.bf16.msra.mxu0 0
        %655 = vmatprep.subr.bf16.mxu0 0
        %656 = vmatpush1.bf16.msra.mxu0 0
        %657 = vmatprep.subr.bf16.mxu0 0
        %658 = vmatpush1.bf16.msra.mxu0 0
        %659 = vmatprep.subr.bf16.mxu0 0
        %660 = vmatpush1.bf16.msra.mxu0 0
        %661 = vmatprep.subr.bf16.mxu0 0
        %662 = vmatpush1.bf16.msra.mxu0 0
        %663 = vmatprep.subr.bf16.mxu0 0
        %664 = vmatpush1.bf16.msra.mxu0 0
        %665 = vmatprep.subr.bf16.mxu0 0
        %666 = vmatpush1.bf16.msra.mxu0 0
        %667 = vmatprep.subr.bf16.mxu0 0
        %668 = vmatpush1.bf16.msra.mxu0 0
        %669 = vmatprep.subr.bf16.mxu0 0
        %670 = vmatpush1.bf16.msra.mxu0 0
        %671 = vmatprep.subr.bf16.mxu0 0
        %672 = vmatpush1.bf16.msra.mxu0 0
        %673 = vmatprep.mubr.bf16.mxu0 0
        %674 = vmatmul.mubr.bf16.gmra.mrb[0].mxu0 %v639
        %v675 = vpop.f32.mrb[0].mxu0
        %v676 = vadd.f32 %v612, %v675
        %v677 = vpop.f32.mrb[0].mxu0
        %v678 = vpop.f32.mrb[0].mxu0
        %v679 = vpop.f32.mrb[0].mxu0
        %680 = vdwg.mxu0
        %v681 = vld [vmem:[%s6] sm:$0xf]
        %v682 = vld [vmem:[%s6 + $0x4] sm:$0xf]
        %v683 = vld [vmem:[%s6 + $0x8] sm:$0xf]
        %v684 = vld [vmem:[%s6 + $0xc] sm:$0xf]
        %v685 = vpack.c.bf16 %v676, %v676
        %v686 = vld [vmem:[%s7] sm:$0x1]
        %v688 = vlaneseq
        %v689 = vshrl.u32 %v688, 7
        %v690 = vsub.s32 0, %v689
        %v691 = vrot.slane %v686, %v690
        %v697 = vunpack.c.l.b16 %v681
        %v698 = vunpack.c.l.b16 %v682
        %v699 = vunpack.c.l.b16 %v683
        %v700 = vunpack.c.l.b16 %v684
        %v701 = vpack.c.b16 %v698, %v697
        %v702 = vpack.c.b16 %v700, %v699
        %vm705 = vcmask 261120
        %v707 = vsel %vm705, %v685, 0
        %709 = vmatprep.subr.bf16.mxu0 0
        %710 = vmatpush1.bf16.msra.mxu0 %v701
        %711 = vmatprep.subr.bf16.mxu0 0
        %712 = vmatpush1.bf16.msra.mxu0 %v702
        %713 = vmatprep.subr.bf16.mxu0 0
        %714 = vmatpush1.bf16.msra.mxu0 0
        %715 = vmatprep.subr.bf16.mxu0 0
        %716 = vmatpush1.bf16.msra.mxu0 0
        %717 = vmatprep.subr.bf16.mxu0 0
        %718 = vmatpush1.bf16.msra.mxu0 0
        %719 = vmatprep.subr.bf16.mxu0 0
        %720 = vmatpush1.bf16.msra.mxu0 0
        %721 = vmatprep.subr.bf16.mxu0 0
        %722 = vmatpush1.bf16.msra.mxu0 0
        %723 = vmatprep.subr.bf16.mxu0 0
        %724 = vmatpush1.bf16.msra.mxu0 0
        %725 = vmatprep.subr.bf16.mxu0 0
        %726 = vmatpush1.bf16.msra.mxu0 0
        %727 = vmatprep.subr.bf16.mxu0 0
        %728 = vmatpush1.bf16.msra.mxu0 0
        %729 = vmatprep.subr.bf16.mxu0 0
        %730 = vmatpush1.bf16.msra.mxu0 0
        %731 = vmatprep.subr.bf16.mxu0 0
        %732 = vmatpush1.bf16.msra.mxu0 0
        %733 = vmatprep.subr.bf16.mxu0 0
        %734 = vmatpush1.bf16.msra.mxu0 0
        %735 = vmatprep.subr.bf16.mxu0 0
        %736 = vmatpush1.bf16.msra.mxu0 0
        %737 = vmatprep.subr.bf16.mxu0 0
        %738 = vmatpush1.bf16.msra.mxu0 0
        %739 = vmatprep.subr.bf16.mxu0 0
        %740 = vmatpush1.bf16.msra.mxu0 0
        %741 = vmatprep.mubr.bf16.mxu0 0
        %742 = vmatmul.mubr.bf16.gmra.mrb[0].mxu0 %v707
        %v743 = vpop.f32.mrb[0].mxu0
        %v744 = vadd.f32 %v691, %v743
        %v745 = vpop.f32.mrb[0].mxu0
        %v746 = vpop.f32.mrb[0].mxu0
        %v747 = vpop.f32.mrb[0].mxu0
        %748 = vdwg.mxu0
        %749 = vst [vmem:[#allocation2] sm:$0xff] %v744
        %v750 = vld [vmem:[#allocation9] sm:$0xf]
        %v751 = vld [vmem:[#allocation9 + $0x4] sm:$0xf]
        %v752 = vld [vmem:[#allocation9 + $0x8] sm:$0xf]
        %v753 = vld [vmem:[#allocation9 + $0xc] sm:$0xf]
        %v754 = vld [vmem:[%s9] sm:$0xf]
        %v755 = vld [vmem:[%s9 + $0x4] sm:$0xf]
        %v756 = vld [vmem:[%s9 + $0x8] sm:$0xf]
        %v757 = vld [vmem:[%s9 + $0xc] sm:$0xf]
        %v758 = vld [vmem:[%s9 + $0x10] sm:$0xf]
        %v759 = vld [vmem:[%s9 + $0x14] sm:$0xf]
        %v760 = vld [vmem:[%s9 + $0x18] sm:$0xf]
        %v761 = vld [vmem:[%s9 + $0x1c] sm:$0xf]
        %v762 = vld [vmem:[%s10] sm:$0x1]
        %v763 = vld [vmem:[#allocation2] sm:$0x1]
        %v764 = vpack.c.bf16 %v590, %v590
        %v769 = vunpack.c.l.b16 %v750
        %v770 = vunpack.c.l.b16 %v751
        %v771 = vunpack.c.l.b16 %v752
        %v772 = vunpack.c.l.b16 %v753
        %v773 = vpack.c.b16 %v770, %v769
        %v774 = vpack.c.b16 %v772, %v771
        %v778 = vsel %vm705, %v764, 0
        %780 = vmatprep.subr.bf16.mxu0 0
        %781 = vmatpush1.bf16.msra.mxu0 %v773
        %782 = vmatprep.subr.bf16.mxu0 0
        %783 = vmatpush1.bf16.msra.mxu0 %v774
        %784 = vmatprep.subr.bf16.mxu0 0
        %785 = vmatpush1.bf16.msra.mxu0 0
        %786 = vmatprep.subr.bf16.mxu0 0
        %787 = vmatpush1.bf16.msra.mxu0 0
        %788 = vmatprep.subr.bf16.mxu0 0
        %789 = vmatpush1.bf16.msra.mxu0 0
        %790 = vmatprep.subr.bf16.mxu0 0
        %791 = vmatpush1.bf16.msra.mxu0 0
        %792 = vmatprep.subr.bf16.mxu0 0
        %793 = vmatpush1.bf16.msra.mxu0 0
        %794 = vmatprep.subr.bf16.mxu0 0
        %795 = vmatpush1.bf16.msra.mxu0 0
        %796 = vmatprep.subr.bf16.mxu0 0
        %797 = vmatpush1.bf16.msra.mxu0 0
        %798 = vmatprep.subr.bf16.mxu0 0
        %799 = vmatpush1.bf16.msra.mxu0 0
        %800 = vmatprep.subr.bf16.mxu0 0
        %801 = vmatpush1.bf16.msra.mxu0 0
        %802 = vmatprep.subr.bf16.mxu0 0
        %803 = vmatpush1.bf16.msra.mxu0 0
        %804 = vmatprep.subr.bf16.mxu0 0
        %805 = vmatpush1.bf16.msra.mxu0 0
        %806 = vmatprep.subr.bf16.mxu0 0
        %807 = vmatpush1.bf16.msra.mxu0 0
        %808 = vmatprep.subr.bf16.mxu0 0
        %809 = vmatpush1.bf16.msra.mxu0 0
        %810 = vmatprep.subr.bf16.mxu0 0
        %811 = vmatpush1.bf16.msra.mxu0 0
        %812 = vmatprep.mubr.bf16.mxu0 0
        %813 = vmatmul.mubr.bf16.gmra.mrb[0].mxu0 %v778
        %v814 = vpop.f32.mrb[0].mxu0
        %v815 = vadd.f32 0.0, %v814
        %v816 = vpop.f32.mrb[0].mxu0
        %v817 = vpop.f32.mrb[0].mxu0
        %v818 = vpop.f32.mrb[0].mxu0
        %819 = vdwg.mxu0
        %v820 = vadd.f32 %v763, %v815
        %v821 = vxor.u32 %v820, 2147483648
        %v822 = vmul.f32 %v821, 1.442695
        %v823 = vpow.pop %v822
        %v824 = vadd.f32 %v823, 1.0
        %v825 = vrcp.pop %v824
        %v826 = vmul.f32 1.0, %v825
        %v827 = vtanh.pop %v820
        %828 = vrot.lane.b32.xlu0 %v590, 32
        %v829 = vpop.permute.xlu0 %828
        %v831 = vmul.f32 %v826, %v829
        %833 = vrot.lane.b32.xlu0 %v827, 64
        %v834 = vpop.permute.xlu0 %833
        %v836 = vmul.f32 %v826, %v834
        %838 = vrot.lane.b32.xlu0 %v836, 32
        %v839 = vpop.permute.xlu0 %838
        %v841 = vadd.f32 %v831, %v839
        %v842 = vtanh.pop %v841
        %844 = vrot.lane.b32.xlu0 %v842, 64
        %v845 = vpop.permute.xlu0 %844
        %v847 = vmul.f32 %v826, %v845
        %849 = vrot.lane.b32.xlu0 %v847, 32
        %v850 = vpop.permute.xlu0 %849
        %v852 = vsel %vm705, %v850, %v829
        %v853 = vpack.c.bf16 %v852, %v852
        %v862 = vunpack.c.l.b16 %v754
        %v863 = vunpack.c.l.b16 %v755
        %v864 = vunpack.c.l.b16 %v756
        %v865 = vunpack.c.l.b16 %v757
        %v866 = vunpack.c.l.b16 %v758
        %v867 = vunpack.c.l.b16 %v759
        %v868 = vunpack.c.l.b16 %v760
        %v869 = vunpack.c.l.b16 %v761
        %v870 = vpack.c.b16 %v863, %v862
        %v871 = vpack.c.b16 %v865, %v864
        %v872 = vpack.c.b16 %v867, %v866
        %v873 = vpack.c.b16 %v869, %v868
        %v879 = vsel %vm538, %v853, 0
        %881 = vmatprep.subr.bf16.mxu0 0
        %882 = vmatpush1.bf16.msra.mxu0 %v870
        %883 = vmatprep.subr.bf16.mxu0 0
        %884 = vmatpush1.bf16.msra.mxu0 %v871
        %885 = vmatprep.subr.bf16.mxu0 0
        %886 = vmatpush1.bf16.msra.mxu0 %v872
        %887 = vmatprep.subr.bf16.mxu0 0
        %888 = vmatpush1.bf16.msra.mxu0 %v873
        %889 = vmatprep.subr.bf16.mxu0 0
        %890 = vmatpush1.bf16.msra.mxu0 0
        %891 = vmatprep.subr.bf16.mxu0 0
        %892 = vmatpush1.bf16.msra.mxu0 0
        %893 = vmatprep.subr.bf16.mxu0 0
        %894 = vmatpush1.bf16.msra.mxu0 0
        %895 = vmatprep.subr.bf16.mxu0 0
        %896 = vmatpush1.bf16.msra.mxu0 0
        %897 = vmatprep.subr.bf16.mxu0 0
        %898 = vmatpush1.bf16.msra.mxu0 0
        %899 = vmatprep.subr.bf16.mxu0 0
        %900 = vmatpush1.bf16.msra.mxu0 0
        %901 = vmatprep.subr.bf16.mxu0 0
        %902 = vmatpush1.bf16.msra.mxu0 0
        %903 = vmatprep.subr.bf16.mxu0 0
        %904 = vmatpush1.bf16.msra.mxu0 0
        %905 = vmatprep.subr.bf16.mxu0 0
        %906 = vmatpush1.bf16.msra.mxu0 0
        %907 = vmatprep.subr.bf16.mxu0 0
        %908 = vmatpush1.bf16.msra.mxu0 0
        %909 = vmatprep.subr.bf16.mxu0 0
        %910 = vmatpush1.bf16.msra.mxu0 0
        %911 = vmatprep.subr.bf16.mxu0 0
        %912 = vmatpush1.bf16.msra.mxu0 0
        %913 = vmatprep.mubr.bf16.mxu0 0
        %914 = vmatmul.mubr.bf16.gmra.mrb[0].mxu0 %v879
        %v915 = vpop.f32.mrb[0].mxu0
        %v916 = vadd.f32 %v762, %v915
        %v917 = vpop.f32.mrb[0].mxu0
        %v918 = vpop.f32.mrb[0].mxu0
        %v919 = vpop.f32.mrb[0].mxu0
        %920 = vdwg.mxu0
        %v921 = vxor.u32 %v916, 2147483648
        %v922 = vmul.f32 %v921, 1.442695
        %v923 = vpow.pop %v922
        %v924 = vadd.f32 %v923, 1.0
        %v925 = vrcp.pop %v924
        %v926 = vmul.f32 1.0, %v925
        %v927 = vtanh.pop %v916
        %v928 = vmul.f32 %v926, %v829
        %930 = vrot.lane.b32.xlu0 %v927, 64
        %v931 = vpop.permute.xlu0 %930
        %v933 = vmul.f32 %v926, %v931
        %935 = vrot.lane.b32.xlu0 %v933, 32
        %v936 = vpop.permute.xlu0 %935
        %v938 = vadd.f32 %v928, %v936
        %v939 = vtanh.pop %v938
        %941 = vrot.lane.b32.xlu0 %v939, 64
        %v942 = vpop.permute.xlu0 %941
        %v944 = vmul.f32 %v926, %v942
        %946 = vrot.lane.b32.xlu0 %v944, 32
        %v947 = vpop.permute.xlu0 %946
        %949 = vst.msk [vmem:[%s485] sm:$0x1] %vm595, %v947
        %v950 = vld [vmem:[#allocation2 + $0x1] sm:$0x1]
        %v951 = vpack.c.bf16 %v847, %v847
        %953 = vrot.lane.b32.xlu0 %v951, 32
        %v954 = vpop.permute.xlu0 %953
        %v956 = vsel %vm705, %v954, 0
        %958 = vmatprep.subr.bf16.mxu0 0
        %959 = vmatpush1.bf16.msra.mxu0 %v773
        %960 = vmatprep.subr.bf16.mxu0 0
        %961 = vmatpush1.bf16.msra.mxu0 %v774
        %962 = vmatprep.subr.bf16.mxu0 0
        %963 = vmatpush1.bf16.msra.mxu0 0
        %964 = vmatprep.subr.bf16.mxu0 0
        %965 = vmatpush1.bf16.msra.mxu0 0
        %966 = vmatprep.subr.bf16.mxu0 0
        %967 = vmatpush1.bf16.msra.mxu0 0
        %968 = vmatprep.subr.bf16.mxu0 0
        %969 = vmatpush1.bf16.msra.mxu0 0
        %970 = vmatprep.subr.bf16.mxu0 0
        %971 = vmatpush1.bf16.msra.mxu0 0
        %972 = vmatprep.subr.bf16.mxu0 0
        %973 = vmatpush1.bf16.msra.mxu0 0
        %974 = vmatprep.subr.bf16.mxu0 0
        %975 = vmatpush1.bf16.msra.mxu0 0
        %976 = vmatprep.subr.bf16.mxu0 0
        %977 = vmatpush1.bf16.msra.mxu0 0
        %978 = vmatprep.subr.bf16.mxu0 0
        %979 = vmatpush1.bf16.msra.mxu0 0
        %980 = vmatprep.subr.bf16.mxu0 0
        %981 = vmatpush1.bf16.msra.mxu0 0
        %982 = vmatprep.subr.bf16.mxu0 0
        %983 = vmatpush1.bf16.msra.mxu0 0
        %984 = vmatprep.subr.bf16.mxu0 0
        %985 = vmatpush1.bf16.msra.mxu0 0
        %986 = vmatprep.subr.bf16.mxu0 0
        %987 = vmatpush1.bf16.msra.mxu0 0
        %988 = vmatprep.subr.bf16.mxu0 0
        %989 = vmatpush1.bf16.msra.mxu0 0
        %990 = vmatprep.mubr.bf16.mxu0 0
        %991 = vmatmul.mubr.bf16.gmra.mrb[0].mxu0 %v956
        %v992 = vpop.f32.mrb[0].mxu0
        %v993 = vadd.f32 0.0, %v992
        %v994 = vpop.f32.mrb[0].mxu0
        %v995 = vpop.f32.mrb[0].mxu0
        %v996 = vpop.f32.mrb[0].mxu0
        %997 = vdwg.mxu0
        %v998 = vadd.f32 %v950, %v993
        %v999 = vxor.u32 %v998, 2147483648
        %v1000 = vmul.f32 %v999, 1.442695
        %v1001 = vpow.pop %v1000
        %v1002 = vadd.f32 %v1001, 1.0
        %v1003 = vrcp.pop %v1002
        %v1004 = vmul.f32 1.0, %v1003
        %v1005 = vtanh.pop %v998
        %v1006 = vmul.f32 %v1004, %v841
        %1008 = vrot.lane.b32.xlu0 %v1005, 64
        %v1009 = vpop.permute.xlu0 %1008
        %v1011 = vmul.f32 %v1004, %v1009
        %1013 = vrot.lane.b32.xlu0 %v1011, 32
        %v1014 = vpop.permute.xlu0 %1013
        %v1016 = vadd.f32 %v1006, %v1014
        %v1017 = vtanh.pop %v1016
        %1019 = vrot.lane.b32.xlu0 %v1017, 64
        %v1020 = vpop.permute.xlu0 %1019
        %v1022 = vmul.f32 %v1004, %v1020
        %1024 = vrot.lane.b32.xlu0 %v1022, 32
        %v1025 = vpop.permute.xlu0 %1024
        %1027 = vrot.lane.b32.xlu0 %v944, 64
        %v1028 = vpop.permute.xlu0 %1027
        %v1030 = vsel %vm705, %v1025, %v1028
        %v1031 = vpack.c.bf16 %v1030, %v1030
        %v1033 = vsel %vm538, %v1031, 0
        %1035 = vmatprep.subr.bf16.mxu0 0
        %1036 = vmatpush1.bf16.msra.mxu0 %v870
        %1037 = vmatprep.subr.bf16.mxu0 0
        %1038 = vmatpush1.bf16.msra.mxu0 %v871
        %1039 = vmatprep.subr.bf16.mxu0 0
        %1040 = vmatpush1.bf16.msra.mxu0 %v872
        %1041 = vmatprep.subr.bf16.mxu0 0
        %1042 = vmatpush1.bf16.msra.mxu0 %v873
        %1043 = vmatprep.subr.bf16.mxu0 0
        %1044 = vmatpush1.bf16.msra.mxu0 0
        %1045 = vmatprep.subr.bf16.mxu0 0
        %1046 = vmatpush1.bf16.msra.mxu0 0
        %1047 = vmatprep.subr.bf16.mxu0 0
        %1048 = vmatpush1.bf16.msra.mxu0 0
        %1049 = vmatprep.subr.bf16.mxu0 0
        %1050 = vmatpush1.bf16.msra.mxu0 0
        %1051 = vmatprep.subr.bf16.mxu0 0
        %1052 = vmatpush1.bf16.msra.mxu0 0
        %1053 = vmatprep.subr.bf16.mxu0 0
        %1054 = vmatpush1.bf16.msra.mxu0 0
        %1055 = vmatprep.subr.bf16.mxu0 0
        %1056 = vmatpush1.bf16.msra.mxu0 0
        %1057 = vmatprep.subr.bf16.mxu0 0
        %1058 = vmatpush1.bf16.msra.mxu0 0
        %1059 = vmatprep.subr.bf16.mxu0 0
        %1060 = vmatpush1.bf16.msra.mxu0 0
        %1061 = vmatprep.subr.bf16.mxu0 0
        %1062 = vmatpush1.bf16.msra.mxu0 0
        %1063 = vmatprep.subr.bf16.mxu0 0
        %1064 = vmatpush1.bf16.msra.mxu0 0
        %1065 = vmatprep.subr.bf16.mxu0 0
        %1066 = vmatpush1.bf16.msra.mxu0 0
        %1067 = vmatprep.mubr.bf16.mxu0 0
        %1068 = vmatmul.mubr.bf16.gmra.mrb[0].mxu0 %v1033
        %v1069 = vpop.f32.mrb[0].mxu0
        %v1070 = vadd.f32 %v762, %v1069
        %v1071 = vpop.f32.mrb[0].mxu0
        %v1072 = vpop.f32.mrb[0].mxu0
        %v1073 = vpop.f32.mrb[0].mxu0
        %1074 = vdwg.mxu0
        %v1075 = vxor.u32 %v1070, 2147483648
        %v1076 = vmul.f32 %v1075, 1.442695
        %v1077 = vpow.pop %v1076
        %v1078 = vadd.f32 %v1077, 1.0
        %v1079 = vrcp.pop %v1078
        %v1080 = vmul.f32 1.0, %v1079
        %v1081 = vtanh.pop %v1070
        %v1082 = vmul.f32 %v1080, %v938
        %1084 = vrot.lane.b32.xlu0 %v1081, 64
        %v1085 = vpop.permute.xlu0 %1084
        %v1087 = vmul.f32 %v1080, %v1085
        %1089 = vrot.lane.b32.xlu0 %v1087, 32
        %v1090 = vpop.permute.xlu0 %1089
        %v1092 = vadd.f32 %v1082, %v1090
        %v1093 = vtanh.pop %v1092
        %1095 = vrot.lane.b32.xlu0 %v1093, 64
        %v1096 = vpop.permute.xlu0 %1095
        %v1098 = vmul.f32 %v1080, %v1096
        %1100 = vrot.lane.b32.xlu0 %v1098, 32
        %v1101 = vpop.permute.xlu0 %1100
        %1103 = vst.msk [vmem:[%s485 + $0x1] sm:$0x1] %vm595, %v1101
        %v1104 = vld [vmem:[#allocation2 + $0x2] sm:$0x1]
        %v1105 = vpack.c.bf16 %v1022, %v1022
        %1107 = vrot.lane.b32.xlu0 %v1105, 32
        %v1108 = vpop.permute.xlu0 %1107
        %v1110 = vsel %vm705, %v1108, 0
        %1112 = vmatprep.subr.bf16.mxu0 0
        %1113 = vmatpush1.bf16.msra.mxu0 %v773
        %1114 = vmatprep.subr.bf16.mxu0 0
        %1115 = vmatpush1.bf16.msra.mxu0 %v774
        %1116 = vmatprep.subr.bf16.mxu0 0
        %1117 = vmatpush1.bf16.msra.mxu0 0
        %1118 = vmatprep.subr.bf16.mxu0 0
        %1119 = vmatpush1.bf16.msra.mxu0 0
        %1120 = vmatprep.subr.bf16.mxu0 0
        %1121 = vmatpush1.bf16.msra.mxu0 0
        %1122 = vmatprep.subr.bf16.mxu0 0
        %1123 = vmatpush1.bf16.msra.mxu0 0
        %1124 = vmatprep.subr.bf16.mxu0 0
        %1125 = vmatpush1.bf16.msra.mxu0 0
        %1126 = vmatprep.subr.bf16.mxu0 0
        %1127 = vmatpush1.bf16.msra.mxu0 0
        %1128 = vmatprep.subr.bf16.mxu0 0
        %1129 = vmatpush1.bf16.msra.mxu0 0
        %1130 = vmatprep.subr.bf16.mxu0 0
        %1131 = vmatpush1.bf16.msra.mxu0 0
        %1132 = vmatprep.subr.bf16.mxu0 0
        %1133 = vmatpush1.bf16.msra.mxu0 0
        %1134 = vmatprep.subr.bf16.mxu0 0
        %1135 = vmatpush1.bf16.msra.mxu0 0
        %1136 = vmatprep.subr.bf16.mxu0 0
        %1137 = vmatpush1.bf16.msra.mxu0 0
        %1138 = vmatprep.subr.bf16.mxu0 0
        %1139 = vmatpush1.bf16.msra.mxu0 0
        %1140 = vmatprep.subr.bf16.mxu0 0
        %1141 = vmatpush1.bf16.msra.mxu0 0
        %1142 = vmatprep.subr.bf16.mxu0 0
        %1143 = vmatpush1.bf16.msra.mxu0 0
        %1144 = vmatprep.mubr.bf16.mxu0 0
        %1145 = vmatmul.mubr.bf16.gmra.mrb[0].mxu0 %v1110
        %v1146 = vpop.f32.mrb[0].mxu0
        %v1147 = vadd.f32 0.0, %v1146
        %v1148 = vpop.f32.mrb[0].mxu0
        %v1149 = vpop.f32.mrb[0].mxu0
        %v1150 = vpop.f32.mrb[0].mxu0
        %1151 = vdwg.mxu0
        %v1152 = vadd.f32 %v1104, %v1147
        %v1153 = vxor.u32 %v1152, 2147483648
        %v1154 = vmul.f32 %v1153, 1.442695
        %v1155 = vpow.pop %v1154
        %v1156 = vadd.f32 %v1155, 1.0
        %v1157 = vrcp.pop %v1156
        %v1158 = vmul.f32 1.0, %v1157
        %v1159 = vtanh.pop %v1152
        %v1160 = vmul.f32 %v1158, %v1016
        %1162 = vrot.lane.b32.xlu0 %v1159, 64
        %v1163 = vpop.permute.xlu0 %1162
        %v1165 = vmul.f32 %v1158, %v1163
        %1167 = vrot.lane.b32.xlu0 %v1165, 32
        %v1168 = vpop.permute.xlu0 %1167
        %v1170 = vadd.f32 %v1160, %v1168
        %v1171 = vtanh.pop %v1170
        %1173 = vrot.lane.b32.xlu0 %v1171, 64
        %v1174 = vpop.permute.xlu0 %1173
        %v1176 = vmul.f32 %v1158, %v1174
        %1178 = vrot.lane.b32.xlu0 %v1176, 32
        %v1179 = vpop.permute.xlu0 %1178
        %1181 = vrot.lane.b32.xlu0 %v1098, 64
        %v1182 = vpop.permute.xlu0 %1181
        %v1184 = vsel %vm705, %v1179, %v1182
        %v1185 = vpack.c.bf16 %v1184, %v1184
        %v1187 = vsel %vm538, %v1185, 0
        %1189 = vmatprep.subr.bf16.mxu0 0
        %1190 = vmatpush1.bf16.msra.mxu0 %v870
        %1191 = vmatprep.subr.bf16.mxu0 0
        %1192 = vmatpush1.bf16.msra.mxu0 %v871
        %1193 = vmatprep.subr.bf16.mxu0 0
        %1194 = vmatpush1.bf16.msra.mxu0 %v872
        %1195 = vmatprep.subr.bf16.mxu0 0
        %1196 = vmatpush1.bf16.msra.mxu0 %v873
        %1197 = vmatprep.subr.bf16.mxu0 0
        %1198 = vmatpush1.bf16.msra.mxu0 0
        %1199 = vmatprep.subr.bf16.mxu0 0
        %1200 = vmatpush1.bf16.msra.mxu0 0
        %1201 = vmatprep.subr.bf16.mxu0 0
        %1202 = vmatpush1.bf16.msra.mxu0 0
        %1203 = vmatprep.subr.bf16.mxu0 0
        %1204 = vmatpush1.bf16.msra.mxu0 0
        %1205 = vmatprep.subr.bf16.mxu0 0
        %1206 = vmatpush1.bf16.msra.mxu0 0
        %1207 = vmatprep.subr.bf16.mxu0 0
        %1208 = vmatpush1.bf16.msra.mxu0 0
        %1209 = vmatprep.subr.bf16.mxu0 0
        %1210 = vmatpush1.bf16.msra.mxu0 0
        %1211 = vmatprep.subr.bf16.mxu0 0
        %1212 = vmatpush1.bf16.msra.mxu0 0
        %1213 = vmatprep.subr.bf16.mxu0 0
        %1214 = vmatpush1.bf16.msra.mxu0 0
        %1215 = vmatprep.subr.bf16.mxu0 0
        %1216 = vmatpush1.bf16.msra.mxu0 0
        %1217 = vmatprep.subr.bf16.mxu0 0
        %1218 = vmatpush1.bf16.msra.mxu0 0
        %1219 = vmatprep.subr.bf16.mxu0 0
        %1220 = vmatpush1.bf16.msra.mxu0 0
        %1221 = vmatprep.mubr.bf16.mxu0 0
        %1222 = vmatmul.mubr.bf16.gmra.mrb[0].mxu0 %v1187
        %v1223 = vpop.f32.mrb[0].mxu0
        %v1224 = vadd.f32 %v762, %v1223
        %v1225 = vpop.f32.mrb[0].mxu0
        %v1226 = vpop.f32.mrb[0].mxu0
        %v1227 = vpop.f32.mrb[0].mxu0
        %1228 = vdwg.mxu0
        %v1229 = vxor.u32 %v1224, 2147483648
        %v1230 = vmul.f32 %v1229, 1.442695
        %v1231 = vpow.pop %v1230
        %v1232 = vadd.f32 %v1231, 1.0
        %v1233 = vrcp.pop %v1232
        %v1234 = vmul.f32 1.0, %v1233
        %v1235 = vtanh.pop %v1224
        %v1236 = vmul.f32 %v1234, %v1092
        %1238 = vrot.lane.b32.xlu0 %v1235, 64
        %v1239 = vpop.permute.xlu0 %1238
        %v1241 = vmul.f32 %v1234, %v1239
        %1243 = vrot.lane.b32.xlu0 %v1241, 32
        %v1244 = vpop.permute.xlu0 %1243
        %v1246 = vadd.f32 %v1236, %v1244
        %v1247 = vtanh.pop %v1246
        %1249 = vrot.lane.b32.xlu0 %v1247, 64
        %v1250 = vpop.permute.xlu0 %1249
        %v1252 = vmul.f32 %v1234, %v1250
        %1254 = vrot.lane.b32.xlu0 %v1252, 32
        %v1255 = vpop.permute.xlu0 %1254
        %1257 = vst.msk [vmem:[%s485 + $0x2] sm:$0x1] %vm595, %v1255
        %v1258 = vld [vmem:[#allocation2 + $0x3] sm:$0x1]
        %v1259 = vpack.c.bf16 %v1176, %v1176
        %1261 = vrot.lane.b32.xlu0 %v1259, 32
        %v1262 = vpop.permute.xlu0 %1261
        %v1264 = vsel %vm705, %v1262, 0
        %1266 = vmatprep.subr.bf16.mxu0 0
        %1267 = vmatpush1.bf16.msra.mxu0 %v773
        %1268 = vmatprep.subr.bf16.mxu0 0
        %1269 = vmatpush1.bf16.msra.mxu0 %v774
        %1270 = vmatprep.subr.bf16.mxu0 0
        %1271 = vmatpush1.bf16.msra.mxu0 0
        %1272 = vmatprep.subr.bf16.mxu0 0
        %1273 = vmatpush1.bf16.msra.mxu0 0
        %1274 = vmatprep.subr.bf16.mxu0 0
        %1275 = vmatpush1.bf16.msra.mxu0 0
        %1276 = vmatprep.subr.bf16.mxu0 0
        %1277 = vmatpush1.bf16.msra.mxu0 0
        %1278 = vmatprep.subr.bf16.mxu0 0
        %1279 = vmatpush1.bf16.msra.mxu0 0
        %1280 = vmatprep.subr.bf16.mxu0 0
        %1281 = vmatpush1.bf16.msra.mxu0 0
        %1282 = vmatprep.subr.bf16.mxu0 0
        %1283 = vmatpush1.bf16.msra.mxu0 0
        %1284 = vmatprep.subr.bf16.mxu0 0
        %1285 = vmatpush1.bf16.msra.mxu0 0
        %1286 = vmatprep.subr.bf16.mxu0 0
        %1287 = vmatpush1.bf16.msra.mxu0 0
        %1288 = vmatprep.subr.bf16.mxu0 0
        %1289 = vmatpush1.bf16.msra.mxu0 0
        %1290 = vmatprep.subr.bf16.mxu0 0
        %1291 = vmatpush1.bf16.msra.mxu0 0
        %1292 = vmatprep.subr.bf16.mxu0 0
        %1293 = vmatpush1.bf16.msra.mxu0 0
        %1294 = vmatprep.subr.bf16.mxu0 0
        %1295 = vmatpush1.bf16.msra.mxu0 0
        %1296 = vmatprep.subr.bf16.mxu0 0
        %1297 = vmatpush1.bf16.msra.mxu0 0
        %1298 = vmatprep.mubr.bf16.mxu0 0
        %1299 = vmatmul.mubr.bf16.gmra.mrb[0].mxu0 %v1264
        %v1300 = vpop.f32.mrb[0].mxu0
        %v1301 = vadd.f32 0.0, %v1300
        %v1302 = vpop.f32.mrb[0].mxu0
        %v1303 = vpop.f32.mrb[0].mxu0
        %v1304 = vpop.f32.mrb[0].mxu0
        %1305 = vdwg.mxu0
        %v1306 = vadd.f32 %v1258, %v1301
        %v1307 = vxor.u32 %v1306, 2147483648
        %v1308 = vmul.f32 %v1307, 1.442695
        %v1309 = vpow.pop %v1308
        %v1310 = vadd.f32 %v1309, 1.0
        %v1311 = vrcp.pop %v1310
        %v1312 = vmul.f32 1.0, %v1311
        %v1313 = vtanh.pop %v1306
        %v1314 = vmul.f32 %v1312, %v1170
        %1316 = vrot.lane.b32.xlu0 %v1313, 64
        %v1317 = vpop.permute.xlu0 %1316
        %v1319 = vmul.f32 %v1312, %v1317
        %1321 = vrot.lane.b32.xlu0 %v1319, 32
        %v1322 = vpop.permute.xlu0 %1321
        %v1324 = vadd.f32 %v1314, %v1322
        %v1325 = vtanh.pop %v1324
        %1327 = vrot.lane.b32.xlu0 %v1325, 64
        %v1328 = vpop.permute.xlu0 %1327
        %v1330 = vmul.f32 %v1312, %v1328
        %1332 = vrot.lane.b32.xlu0 %v1330, 32
        %v1333 = vpop.permute.xlu0 %1332
        %1335 = vrot.lane.b32.xlu0 %v1252, 64
        %v1336 = vpop.permute.xlu0 %1335
        %v1338 = vsel %vm705, %v1333, %v1336
        %v1339 = vpack.c.bf16 %v1338, %v1338
        %v1341 = vsel %vm538, %v1339, 0
        %1343 = vmatprep.subr.bf16.mxu0 0
        %1344 = vmatpush1.bf16.msra.mxu0 %v870
        %1345 = vmatprep.subr.bf16.mxu0 0
        %1346 = vmatpush1.bf16.msra.mxu0 %v871
        %1347 = vmatprep.subr.bf16.mxu0 0
        %1348 = vmatpush1.bf16.msra.mxu0 %v872
        %1349 = vmatprep.subr.bf16.mxu0 0
        %1350 = vmatpush1.bf16.msra.mxu0 %v873
        %1351 = vmatprep.subr.bf16.mxu0 0
        %1352 = vmatpush1.bf16.msra.mxu0 0
        %1353 = vmatprep.subr.bf16.mxu0 0
        %1354 = vmatpush1.bf16.msra.mxu0 0
        %1355 = vmatprep.subr.bf16.mxu0 0
        %1356 = vmatpush1.bf16.msra.mxu0 0
        %1357 = vmatprep.subr.bf16.mxu0 0
        %1358 = vmatpush1.bf16.msra.mxu0 0
        %1359 = vmatprep.subr.bf16.mxu0 0
        %1360 = vmatpush1.bf16.msra.mxu0 0
        %1361 = vmatprep.subr.bf16.mxu0 0
        %1362 = vmatpush1.bf16.msra.mxu0 0
        %1363 = vmatprep.subr.bf16.mxu0 0
        %1364 = vmatpush1.bf16.msra.mxu0 0
        %1365 = vmatprep.subr.bf16.mxu0 0
        %1366 = vmatpush1.bf16.msra.mxu0 0
        %1367 = vmatprep.subr.bf16.mxu0 0
        %1368 = vmatpush1.bf16.msra.mxu0 0
        %1369 = vmatprep.subr.bf16.mxu0 0
        %1370 = vmatpush1.bf16.msra.mxu0 0
        %1371 = vmatprep.subr.bf16.mxu0 0
        %1372 = vmatpush1.bf16.msra.mxu0 0
        %1373 = vmatprep.subr.bf16.mxu0 0
        %1374 = vmatpush1.bf16.msra.mxu0 0
        %1375 = vmatprep.mubr.bf16.mxu0 0
        %1376 = vmatmul.mubr.bf16.gmra.mrb[0].mxu0 %v1341
        %v1377 = vpop.f32.mrb[0].mxu0
        %v1378 = vadd.f32 %v762, %v1377
        %v1379 = vpop.f32.mrb[0].mxu0
        %v1380 = vpop.f32.mrb[0].mxu0
        %v1381 = vpop.f32.mrb[0].mxu0
        %1382 = vdwg.mxu0
        %v1383 = vxor.u32 %v1378, 2147483648
        %v1384 = vmul.f32 %v1383, 1.442695
        %v1385 = vpow.pop %v1384
        %v1386 = vadd.f32 %v1385, 1.0
        %v1387 = vrcp.pop %v1386
        %v1388 = vmul.f32 1.0, %v1387
        %v1389 = vtanh.pop %v1378
        %v1390 = vmul.f32 %v1388, %v1246
        %1392 = vrot.lane.b32.xlu0 %v1389, 64
        %v1393 = vpop.permute.xlu0 %1392
        %v1395 = vmul.f32 %v1388, %v1393
        %1397 = vrot.lane.b32.xlu0 %v1395, 32
        %v1398 = vpop.permute.xlu0 %1397
        %v1400 = vadd.f32 %v1390, %v1398
        %v1401 = vtanh.pop %v1400
        %1403 = vrot.lane.b32.xlu0 %v1401, 64
        %v1404 = vpop.permute.xlu0 %1403
        %v1406 = vmul.f32 %v1388, %v1404
        %1408 = vrot.lane.b32.xlu0 %v1406, 32
        %v1409 = vpop.permute.xlu0 %1408
        %1411 = vst.msk [vmem:[%s485 + $0x3] sm:$0x1] %vm595, %v1409
        %v1412 = vld [vmem:[#allocation2 + $0x4] sm:$0x1]
        %v1413 = vpack.c.bf16 %v1330, %v1330
        %1415 = vrot.lane.b32.xlu0 %v1413, 32
        %v1416 = vpop.permute.xlu0 %1415
        %v1418 = vsel %vm705, %v1416, 0
        %1420 = vmatprep.subr.bf16.mxu0 0
        %1421 = vmatpush1.bf16.msra.mxu0 %v773
        %1422 = vmatprep.subr.bf16.mxu0 0
        %1423 = vmatpush1.bf16.msra.mxu0 %v774
        %1424 = vmatprep.subr.bf16.mxu0 0
        %1425 = vmatpush1.bf16.msra.mxu0 0
        %1426 = vmatprep.subr.bf16.mxu0 0
        %1427 = vmatpush1.bf16.msra.mxu0 0
        %1428 = vmatprep.subr.bf16.mxu0 0
        %1429 = vmatpush1.bf16.msra.mxu0 0
        %1430 = vmatprep.subr.bf16.mxu0 0
        %1431 = vmatpush1.bf16.msra.mxu0 0
        %1432 = vmatprep.subr.bf16.mxu0 0
        %1433 = vmatpush1.bf16.msra.mxu0 0
        %1434 = vmatprep.subr.bf16.mxu0 0
        %1435 = vmatpush1.bf16.msra.mxu0 0
        %1436 = vmatprep.subr.bf16.mxu0 0
        %1437 = vmatpush1.bf16.msra.mxu0 0
        %1438 = vmatprep.subr.bf16.mxu0 0
        %1439 = vmatpush1.bf16.msra.mxu0 0
        %1440 = vmatprep.subr.bf16.mxu0 0
        %1441 = vmatpush1.bf16.msra.mxu0 0
        %1442 = vmatprep.subr.bf16.mxu0 0
        %1443 = vmatpush1.bf16.msra.mxu0 0
        %1444 = vmatprep.subr.bf16.mxu0 0
        %1445 = vmatpush1.bf16.msra.mxu0 0
        %1446 = vmatprep.subr.bf16.mxu0 0
        %1447 = vmatpush1.bf16.msra.mxu0 0
        %1448 = vmatprep.subr.bf16.mxu0 0
        %1449 = vmatpush1.bf16.msra.mxu0 0
        %1450 = vmatprep.subr.bf16.mxu0 0
        %1451 = vmatpush1.bf16.msra.mxu0 0
        %1452 = vmatprep.mubr.bf16.mxu0 0
        %1453 = vmatmul.mubr.bf16.gmra.mrb[0].mxu0 %v1418
        %v1454 = vpop.f32.mrb[0].mxu0
        %v1455 = vadd.f32 0.0, %v1454
        %v1456 = vpop.f32.mrb[0].mxu0
        %v1457 = vpop.f32.mrb[0].mxu0
        %v1458 = vpop.f32.mrb[0].mxu0
        %1459 = vdwg.mxu0
        %v1460 = vadd.f32 %v1412, %v1455
        %v1461 = vxor.u32 %v1460, 2147483648
        %v1462 = vmul.f32 %v1461, 1.442695
        %v1463 = vpow.pop %v1462
        %v1464 = vadd.f32 %v1463, 1.0
        %v1465 = vrcp.pop %v1464
        %v1466 = vmul.f32 1.0, %v1465
        %v1467 = vtanh.pop %v1460
        %v1468 = vmul.f32 %v1466, %v1324
        %1470 = vrot.lane.b32.xlu0 %v1467, 64
        %v1471 = vpop.permute.xlu0 %1470
        %v1473 = vmul.f32 %v1466, %v1471
        %1475 = vrot.lane.b32.xlu0 %v1473, 32
        %v1476 = vpop.permute.xlu0 %1475
        %v1478 = vadd.f32 %v1468, %v1476
        %v1479 = vtanh.pop %v1478
        %1481 = vrot.lane.b32.xlu0 %v1479, 64
        %v1482 = vpop.permute.xlu0 %1481
        %v1484 = vmul.f32 %v1466, %v1482
        %1486 = vrot.lane.b32.xlu0 %v1484, 32
        %v1487 = vpop.permute.xlu0 %1486
        %1489 = vrot.lane.b32.xlu0 %v1406, 64
        %v1490 = vpop.permute.xlu0 %1489
        %v1492 = vsel %vm705, %v1487, %v1490
        %v1493 = vpack.c.bf16 %v1492, %v1492
        %v1495 = vsel %vm538, %v1493, 0
        %1497 = vmatprep.subr.bf16.mxu0 0
        %1498 = vmatpush1.bf16.msra.mxu0 %v870
        %1499 = vmatprep.subr.bf16.mxu0 0
        %1500 = vmatpush1.bf16.msra.mxu0 %v871
        %1501 = vmatprep.subr.bf16.mxu0 0
        %1502 = vmatpush1.bf16.msra.mxu0 %v872
        %1503 = vmatprep.subr.bf16.mxu0 0
        %1504 = vmatpush1.bf16.msra.mxu0 %v873
        %1505 = vmatprep.subr.bf16.mxu0 0
        %1506 = vmatpush1.bf16.msra.mxu0 0
        %1507 = vmatprep.subr.bf16.mxu0 0
        %1508 = vmatpush1.bf16.msra.mxu0 0
        %1509 = vmatprep.subr.bf16.mxu0 0
        %1510 = vmatpush1.bf16.msra.mxu0 0
        %1511 = vmatprep.subr.bf16.mxu0 0
        %1512 = vmatpush1.bf16.msra.mxu0 0
        %1513 = vmatprep.subr.bf16.mxu0 0
        %1514 = vmatpush1.bf16.msra.mxu0 0
        %1515 = vmatprep.subr.bf16.mxu0 0
        %1516 = vmatpush1.bf16.msra.mxu0 0
        %1517 = vmatprep.subr.bf16.mxu0 0
        %1518 = vmatpush1.bf16.msra.mxu0 0
        %1519 = vmatprep.subr.bf16.mxu0 0
        %1520 = vmatpush1.bf16.msra.mxu0 0
        %1521 = vmatprep.subr.bf16.mxu0 0
        %1522 = vmatpush1.bf16.msra.mxu0 0
        %1523 = vmatprep.subr.bf16.mxu0 0
        %1524 = vmatpush1.bf16.msra.mxu0 0
        %1525 = vmatprep.subr.bf16.mxu0 0
        %1526 = vmatpush1.bf16.msra.mxu0 0
        %1527 = vmatprep.subr.bf16.mxu0 0
        %1528 = vmatpush1.bf16.msra.mxu0 0
        %1529 = vmatprep.mubr.bf16.mxu0 0
        %1530 = vmatmul.mubr.bf16.gmra.mrb[0].mxu0 %v1495
        %v1531 = vpop.f32.mrb[0].mxu0
        %v1532 = vadd.f32 %v762, %v1531
        %v1533 = vpop.f32.mrb[0].mxu0
        %v1534 = vpop.f32.mrb[0].mxu0
        %v1535 = vpop.f32.mrb[0].mxu0
        %1536 = vdwg.mxu0
        %v1537 = vxor.u32 %v1532, 2147483648
        %v1538 = vmul.f32 %v1537, 1.442695
        %v1539 = vpow.pop %v1538
        %v1540 = vadd.f32 %v1539, 1.0
        %v1541 = vrcp.pop %v1540
        %v1542 = vmul.f32 1.0, %v1541
        %v1543 = vtanh.pop %v1532
        %v1544 = vmul.f32 %v1542, %v1400
        %1546 = vrot.lane.b32.xlu0 %v1543, 64
        %v1547 = vpop.permute.xlu0 %1546
        %v1549 = vmul.f32 %v1542, %v1547
        %1551 = vrot.lane.b32.xlu0 %v1549, 32
        %v1552 = vpop.permute.xlu0 %1551
        %v1554 = vadd.f32 %v1544, %v1552
        %v1555 = vtanh.pop %v1554
        %1557 = vrot.lane.b32.xlu0 %v1555, 64
        %v1558 = vpop.permute.xlu0 %1557
        %v1560 = vmul.f32 %v1542, %v1558
        %1562 = vrot.lane.b32.xlu0 %v1560, 32
        %v1563 = vpop.permute.xlu0 %1562
        %1565 = vst.msk [vmem:[%s485 + $0x4] sm:$0x1] %vm595, %v1563
        %v1566 = vld [vmem:[#allocation2 + $0x5] sm:$0x1]
        %v1567 = vpack.c.bf16 %v1484, %v1484
        %1569 = vrot.lane.b32.xlu0 %v1567, 32
        %v1570 = vpop.permute.xlu0 %1569
        %v1572 = vsel %vm705, %v1570, 0
        %1574 = vmatprep.subr.bf16.mxu0 0
        %1575 = vmatpush1.bf16.msra.mxu0 %v773
        %1576 = vmatprep.subr.bf16.mxu0 0
        %1577 = vmatpush1.bf16.msra.mxu0 %v774
        %1578 = vmatprep.subr.bf16.mxu0 0
        %1579 = vmatpush1.bf16.msra.mxu0 0
        %1580 = vmatprep.subr.bf16.mxu0 0
        %1581 = vmatpush1.bf16.msra.mxu0 0
        %1582 = vmatprep.subr.bf16.mxu0 0
        %1583 = vmatpush1.bf16.msra.mxu0 0
        %1584 = vmatprep.subr.bf16.mxu0 0
        %1585 = vmatpush1.bf16.msra.mxu0 0
        %1586 = vmatprep.subr.bf16.mxu0 0
        %1587 = vmatpush1.bf16.msra.mxu0 0
        %1588 = vmatprep.subr.bf16.mxu0 0
        %1589 = vmatpush1.bf16.msra.mxu0 0
        %1590 = vmatprep.subr.bf16.mxu0 0
        %1591 = vmatpush1.bf16.msra.mxu0 0
        %1592 = vmatprep.subr.bf16.mxu0 0
        %1593 = vmatpush1.bf16.msra.mxu0 0
        %1594 = vmatprep.subr.bf16.mxu0 0
        %1595 = vmatpush1.bf16.msra.mxu0 0
        %1596 = vmatprep.subr.bf16.mxu0 0
        %1597 = vmatpush1.bf16.msra.mxu0 0
        %1598 = vmatprep.subr.bf16.mxu0 0
        %1599 = vmatpush1.bf16.msra.mxu0 0
        %1600 = vmatprep.subr.bf16.mxu0 0
        %1601 = vmatpush1.bf16.msra.mxu0 0
        %1602 = vmatprep.subr.bf16.mxu0 0
        %1603 = vmatpush1.bf16.msra.mxu0 0
        %1604 = vmatprep.subr.bf16.mxu0 0
        %1605 = vmatpush1.bf16.msra.mxu0 0
        %1606 = vmatprep.mubr.bf16.mxu0 0
        %1607 = vmatmul.mubr.bf16.gmra.mrb[0].mxu0 %v1572
        %v1608 = vpop.f32.mrb[0].mxu0
        %v1609 = vadd.f32 0.0, %v1608
        %v1610 = vpop.f32.mrb[0].mxu0
        %v1611 = vpop.f32.mrb[0].mxu0
        %v1612 = vpop.f32.mrb[0].mxu0
        %1613 = vdwg.mxu0
        %v1614 = vadd.f32 %v1566, %v1609
        %v1615 = vxor.u32 %v1614, 2147483648
        %v1616 = vmul.f32 %v1615, 1.442695
        %v1617 = vpow.pop %v1616
        %v1618 = vadd.f32 %v1617, 1.0
        %v1619 = vrcp.pop %v1618
        %v1620 = vmul.f32 1.0, %v1619
        %v1621 = vtanh.pop %v1614
        %v1622 = vmul.f32 %v1620, %v1478
        %1624 = vrot.lane.b32.xlu0 %v1621, 64
        %v1625 = vpop.permute.xlu0 %1624
        %v1627 = vmul.f32 %v1620, %v1625
        %1629 = vrot.lane.b32.xlu0 %v1627, 32
        %v1630 = vpop.permute.xlu0 %1629
        %v1632 = vadd.f32 %v1622, %v1630
        %v1633 = vtanh.pop %v1632
        %1635 = vrot.lane.b32.xlu0 %v1633, 64
        %v1636 = vpop.permute.xlu0 %1635
        %v1638 = vmul.f32 %v1620, %v1636
        %1640 = vrot.lane.b32.xlu0 %v1638, 32
        %v1641 = vpop.permute.xlu0 %1640
        %1643 = vrot.lane.b32.xlu0 %v1560, 64
        %v1644 = vpop.permute.xlu0 %1643
        %v1646 = vsel %vm705, %v1641, %v1644
        %v1647 = vpack.c.bf16 %v1646, %v1646
        %v1649 = vsel %vm538, %v1647, 0
        %1651 = vmatprep.subr.bf16.mxu0 0
        %1652 = vmatpush1.bf16.msra.mxu0 %v870
        %1653 = vmatprep.subr.bf16.mxu0 0
        %1654 = vmatpush1.bf16.msra.mxu0 %v871
        %1655 = vmatprep.subr.bf16.mxu0 0
        %1656 = vmatpush1.bf16.msra.mxu0 %v872
        %1657 = vmatprep.subr.bf16.mxu0 0
        %1658 = vmatpush1.bf16.msra.mxu0 %v873
        %1659 = vmatprep.subr.bf16.mxu0 0
        %1660 = vmatpush1.bf16.msra.mxu0 0
        %1661 = vmatprep.subr.bf16.mxu0 0
        %1662 = vmatpush1.bf16.msra.mxu0 0
        %1663 = vmatprep.subr.bf16.mxu0 0
        %1664 = vmatpush1.bf16.msra.mxu0 0
        %1665 = vmatprep.subr.bf16.mxu0 0
        %1666 = vmatpush1.bf16.msra.mxu0 0
        %1667 = vmatprep.subr.bf16.mxu0 0
        %1668 = vmatpush1.bf16.msra.mxu0 0
        %1669 = vmatprep.subr.bf16.mxu0 0
        %1670 = vmatpush1.bf16.msra.mxu0 0
        %1671 = vmatprep.subr.bf16.mxu0 0
        %1672 = vmatpush1.bf16.msra.mxu0 0
        %1673 = vmatprep.subr.bf16.mxu0 0
        %1674 = vmatpush1.bf16.msra.mxu0 0
        %1675 = vmatprep.subr.bf16.mxu0 0
        %1676 = vmatpush1.bf16.msra.mxu0 0
        %1677 = vmatprep.subr.bf16.mxu0 0
        %1678 = vmatpush1.bf16.msra.mxu0 0
        %1679 = vmatprep.subr.bf16.mxu0 0
        %1680 = vmatpush1.bf16.msra.mxu0 0
        %1681 = vmatprep.subr.bf16.mxu0 0
        %1682 = vmatpush1.bf16.msra.mxu0 0
        %1683 = vmatprep.mubr.bf16.mxu0 0
        %1684 = vmatmul.mubr.bf16.gmra.mrb[0].mxu0 %v1649
        %v1685 = vpop.f32.mrb[0].mxu0
        %v1686 = vadd.f32 %v762, %v1685
        %v1687 = vpop.f32.mrb[0].mxu0
        %v1688 = vpop.f32.mrb[0].mxu0
        %v1689 = vpop.f32.mrb[0].mxu0
        %1690 = vdwg.mxu0
        %v1691 = vxor.u32 %v1686, 2147483648
        %v1692 = vmul.f32 %v1691, 1.442695
        %v1693 = vpow.pop %v1692
        %v1694 = vadd.f32 %v1693, 1.0
        %v1695 = vrcp.pop %v1694
        %v1696 = vmul.f32 1.0, %v1695
        %v1697 = vtanh.pop %v1686
        %v1698 = vmul.f32 %v1696, %v1554
        %1700 = vrot.lane.b32.xlu0 %v1697, 64
        %v1701 = vpop.permute.xlu0 %1700
        %v1703 = vmul.f32 %v1696, %v1701
        %1705 = vrot.lane.b32.xlu0 %v1703, 32
        %v1706 = vpop.permute.xlu0 %1705
        %v1708 = vadd.f32 %v1698, %v1706
        %v1709 = vtanh.pop %v1708
        %1711 = vrot.lane.b32.xlu0 %v1709, 64
        %v1712 = vpop.permute.xlu0 %1711
        %v1714 = vmul.f32 %v1696, %v1712
        %1716 = vrot.lane.b32.xlu0 %v1714, 32
        %v1717 = vpop.permute.xlu0 %1716
        %1719 = vst.msk [vmem:[%s485 + $0x5] sm:$0x1] %vm595, %v1717
        %v1720 = vld [vmem:[#allocation2 + $0x6] sm:$0x1]
        %v1721 = vpack.c.bf16 %v1638, %v1638
        %1723 = vrot.lane.b32.xlu0 %v1721, 32
        %v1724 = vpop.permute.xlu0 %1723
        %v1726 = vsel %vm705, %v1724, 0
        %1728 = vmatprep.subr.bf16.mxu0 0
        %1729 = vmatpush1.bf16.msra.mxu0 %v773
        %1730 = vmatprep.subr.bf16.mxu0 0
        %1731 = vmatpush1.bf16.msra.mxu0 %v774
        %1732 = vmatprep.subr.bf16.mxu0 0
        %1733 = vmatpush1.bf16.msra.mxu0 0
        %1734 = vmatprep.subr.bf16.mxu0 0
        %1735 = vmatpush1.bf16.msra.mxu0 0
        %1736 = vmatprep.subr.bf16.mxu0 0
        %1737 = vmatpush1.bf16.msra.mxu0 0
        %1738 = vmatprep.subr.bf16.mxu0 0
        %1739 = vmatpush1.bf16.msra.mxu0 0
        %1740 = vmatprep.subr.bf16.mxu0 0
        %1741 = vmatpush1.bf16.msra.mxu0 0
        %1742 = vmatprep.subr.bf16.mxu0 0
        %1743 = vmatpush1.bf16.msra.mxu0 0
        %1744 = vmatprep.subr.bf16.mxu0 0
        %1745 = vmatpush1.bf16.msra.mxu0 0
        %1746 = vmatprep.subr.bf16.mxu0 0
        %1747 = vmatpush1.bf16.msra.mxu0 0
        %1748 = vmatprep.subr.bf16.mxu0 0
        %1749 = vmatpush1.bf16.msra.mxu0 0
        %1750 = vmatprep.subr.bf16.mxu0 0
        %1751 = vmatpush1.bf16.msra.mxu0 0
        %1752 = vmatprep.subr.bf16.mxu0 0
        %1753 = vmatpush1.bf16.msra.mxu0 0
        %1754 = vmatprep.subr.bf16.mxu0 0
        %1755 = vmatpush1.bf16.msra.mxu0 0
        %1756 = vmatprep.subr.bf16.mxu0 0
        %1757 = vmatpush1.bf16.msra.mxu0 0
        %1758 = vmatprep.subr.bf16.mxu0 0
        %1759 = vmatpush1.bf16.msra.mxu0 0
        %1760 = vmatprep.mubr.bf16.mxu0 0
        %1761 = vmatmul.mubr.bf16.gmra.mrb[0].mxu0 %v1726
        %v1762 = vpop.f32.mrb[0].mxu0
        %v1763 = vadd.f32 0.0, %v1762
        %v1764 = vpop.f32.mrb[0].mxu0
        %v1765 = vpop.f32.mrb[0].mxu0
        %v1766 = vpop.f32.mrb[0].mxu0
        %1767 = vdwg.mxu0
        %v1768 = vadd.f32 %v1720, %v1763
        %v1769 = vxor.u32 %v1768, 2147483648
        %v1770 = vmul.f32 %v1769, 1.442695
        %v1771 = vpow.pop %v1770
        %v1772 = vadd.f32 %v1771, 1.0
        %v1773 = vrcp.pop %v1772
        %v1774 = vmul.f32 1.0, %v1773
        %v1775 = vtanh.pop %v1768
        %v1776 = vmul.f32 %v1774, %v1632
        %1778 = vrot.lane.b32.xlu0 %v1775, 64
        %v1779 = vpop.permute.xlu0 %1778
        %v1781 = vmul.f32 %v1774, %v1779
        %1783 = vrot.lane.b32.xlu0 %v1781, 32
        %v1784 = vpop.permute.xlu0 %1783
        %v1786 = vadd.f32 %v1776, %v1784
        %v1787 = vtanh.pop %v1786
        %1789 = vrot.lane.b32.xlu0 %v1787, 64
        %v1790 = vpop.permute.xlu0 %1789
        %v1792 = vmul.f32 %v1774, %v1790
        %1794 = vrot.lane.b32.xlu0 %v1792, 32
        %v1795 = vpop.permute.xlu0 %1794
        %1797 = vrot.lane.b32.xlu0 %v1714, 64
        %v1798 = vpop.permute.xlu0 %1797
        %v1800 = vsel %vm705, %v1795, %v1798
        %v1801 = vpack.c.bf16 %v1800, %v1800
        %v1803 = vsel %vm538, %v1801, 0
        %1805 = vmatprep.subr.bf16.mxu0 0
        %1806 = vmatpush1.bf16.msra.mxu0 %v870
        %1807 = vmatprep.subr.bf16.mxu0 0
        %1808 = vmatpush1.bf16.msra.mxu0 %v871
        %1809 = vmatprep.subr.bf16.mxu0 0
        %1810 = vmatpush1.bf16.msra.mxu0 %v872
        %1811 = vmatprep.subr.bf16.mxu0 0
        %1812 = vmatpush1.bf16.msra.mxu0 %v873
        %1813 = vmatprep.subr.bf16.mxu0 0
        %1814 = vmatpush1.bf16.msra.mxu0 0
        %1815 = vmatprep.subr.bf16.mxu0 0
        %1816 = vmatpush1.bf16.msra.mxu0 0
        %1817 = vmatprep.subr.bf16.mxu0 0
        %1818 = vmatpush1.bf16.msra.mxu0 0
        %1819 = vmatprep.subr.bf16.mxu0 0
        %1820 = vmatpush1.bf16.msra.mxu0 0
        %1821 = vmatprep.subr.bf16.mxu0 0
        %1822 = vmatpush1.bf16.msra.mxu0 0
        %1823 = vmatprep.subr.bf16.mxu0 0
        %1824 = vmatpush1.bf16.msra.mxu0 0
        %1825 = vmatprep.subr.bf16.mxu0 0
        %1826 = vmatpush1.bf16.msra.mxu0 0
        %1827 = vmatprep.subr.bf16.mxu0 0
        %1828 = vmatpush1.bf16.msra.mxu0 0
        %1829 = vmatprep.subr.bf16.mxu0 0
        %1830 = vmatpush1.bf16.msra.mxu0 0
        %1831 = vmatprep.subr.bf16.mxu0 0
        %1832 = vmatpush1.bf16.msra.mxu0 0
        %1833 = vmatprep.subr.bf16.mxu0 0
        %1834 = vmatpush1.bf16.msra.mxu0 0
        %1835 = vmatprep.subr.bf16.mxu0 0
        %1836 = vmatpush1.bf16.msra.mxu0 0
        %1837 = vmatprep.mubr.bf16.mxu0 0
        %1838 = vmatmul.mubr.bf16.gmra.mrb[0].mxu0 %v1803
        %v1839 = vpop.f32.mrb[0].mxu0
        %v1840 = vadd.f32 %v762, %v1839
        %v1841 = vpop.f32.mrb[0].mxu0
        %v1842 = vpop.f32.mrb[0].mxu0
        %v1843 = vpop.f32.mrb[0].mxu0
        %1844 = vdwg.mxu0
        %v1845 = vxor.u32 %v1840, 2147483648
        %v1846 = vmul.f32 %v1845, 1.442695
        %v1847 = vpow.pop %v1846
        %v1848 = vadd.f32 %v1847, 1.0
        %v1849 = vrcp.pop %v1848
        %v1850 = vmul.f32 1.0, %v1849
        %v1851 = vtanh.pop %v1840
        %v1852 = vmul.f32 %v1850, %v1708
        %1854 = vrot.lane.b32.xlu0 %v1851, 64
        %v1855 = vpop.permute.xlu0 %1854
        %v1857 = vmul.f32 %v1850, %v1855
        %1859 = vrot.lane.b32.xlu0 %v1857, 32
        %v1860 = vpop.permute.xlu0 %1859
        %v1862 = vadd.f32 %v1852, %v1860
        %v1863 = vtanh.pop %v1862
        %1865 = vrot.lane.b32.xlu0 %v1863, 64
        %v1866 = vpop.permute.xlu0 %1865
        %v1868 = vmul.f32 %v1850, %v1866
        %1870 = vrot.lane.b32.xlu0 %v1868, 32
        %v1871 = vpop.permute.xlu0 %1870
        %1873 = vst.msk [vmem:[%s485 + $0x6] sm:$0x1] %vm595, %v1871
        %v1874 = vld [vmem:[#allocation2 + $0x7] sm:$0x1]
        %v1875 = vpack.c.bf16 %v1792, %v1792
        %1877 = vrot.lane.b32.xlu0 %v1875, 32
        %v1878 = vpop.permute.xlu0 %1877
        %v1880 = vsel %vm705, %v1878, 0
        %1882 = vmatprep.subr.bf16.mxu0 0
        %1883 = vmatpush1.bf16.msra.mxu0 %v773
        %1884 = vmatprep.subr.bf16.mxu0 0
        %1885 = vmatpush1.bf16.msra.mxu0 %v774
        %1886 = vmatprep.subr.bf16.mxu0 0
        %1887 = vmatpush1.bf16.msra.mxu0 0
        %1888 = vmatprep.subr.bf16.mxu0 0
        %1889 = vmatpush1.bf16.msra.mxu0 0
        %1890 = vmatprep.subr.bf16.mxu0 0
        %1891 = vmatpush1.bf16.msra.mxu0 0
        %1892 = vmatprep.subr.bf16.mxu0 0
        %1893 = vmatpush1.bf16.msra.mxu0 0
        %1894 = vmatprep.subr.bf16.mxu0 0
        %1895 = vmatpush1.bf16.msra.mxu0 0
        %1896 = vmatprep.subr.bf16.mxu0 0
        %1897 = vmatpush1.bf16.msra.mxu0 0
        %1898 = vmatprep.subr.bf16.mxu0 0
        %1899 = vmatpush1.bf16.msra.mxu0 0
        %1900 = vmatprep.subr.bf16.mxu0 0
        %1901 = vmatpush1.bf16.msra.mxu0 0
        %1902 = vmatprep.subr.bf16.mxu0 0
        %1903 = vmatpush1.bf16.msra.mxu0 0
        %1904 = vmatprep.subr.bf16.mxu0 0
        %1905 = vmatpush1.bf16.msra.mxu0 0
        %1906 = vmatprep.subr.bf16.mxu0 0
        %1907 = vmatpush1.bf16.msra.mxu0 0
        %1908 = vmatprep.subr.bf16.mxu0 0
        %1909 = vmatpush1.bf16.msra.mxu0 0
        %1910 = vmatprep.subr.bf16.mxu0 0
        %1911 = vmatpush1.bf16.msra.mxu0 0
        %1912 = vmatprep.subr.bf16.mxu0 0
        %1913 = vmatpush1.bf16.msra.mxu0 0
        %1914 = vmatprep.mubr.bf16.mxu0 0
        %1915 = vmatmul.mubr.bf16.gmra.mrb[0].mxu0 %v1880
        %v1916 = vpop.f32.mrb[0].mxu0
        %v1917 = vadd.f32 0.0, %v1916
        %v1918 = vpop.f32.mrb[0].mxu0
        %v1919 = vpop.f32.mrb[0].mxu0
        %v1920 = vpop.f32.mrb[0].mxu0
        %1921 = vdwg.mxu0
        %v1922 = vadd.f32 %v1874, %v1917
        %v1923 = vxor.u32 %v1922, 2147483648
        %v1924 = vmul.f32 %v1923, 1.442695
        %v1925 = vpow.pop %v1924
        %v1926 = vadd.f32 %v1925, 1.0
        %v1927 = vrcp.pop %v1926
        %v1928 = vmul.f32 1.0, %v1927
        %v1929 = vtanh.pop %v1922
        %v1930 = vmul.f32 %v1928, %v1786
        %1932 = vrot.lane.b32.xlu0 %v1929, 64
        %v1933 = vpop.permute.xlu0 %1932
        %v1935 = vmul.f32 %v1928, %v1933
        %1937 = vrot.lane.b32.xlu0 %v1935, 32
        %v1938 = vpop.permute.xlu0 %1937
        %v1940 = vadd.f32 %v1930, %v1938
        %v1941 = vtanh.pop %v1940
        %1943 = vrot.lane.b32.xlu0 %v1941, 64
        %v1944 = vpop.permute.xlu0 %1943
        %v1946 = vmul.f32 %v1928, %v1944
        %1948 = vrot.lane.b32.xlu0 %v1946, 32
        %v1949 = vpop.permute.xlu0 %1948
        %1951 = vrot.lane.b32.xlu0 %v1868, 64
        %v1952 = vpop.permute.xlu0 %1951
        %v1954 = vsel %vm705, %v1949, %v1952
        %v1955 = vpack.c.bf16 %v1954, %v1954
        %v1957 = vsel %vm538, %v1955, 0
        %1959 = vmatprep.subr.bf16.mxu0 0
        %1960 = vmatpush1.bf16.msra.mxu0 %v870
        %1961 = vmatprep.subr.bf16.mxu0 0
        %1962 = vmatpush1.bf16.msra.mxu0 %v871
        %1963 = vmatprep.subr.bf16.mxu0 0
        %1964 = vmatpush1.bf16.msra.mxu0 %v872
        %1965 = vmatprep.subr.bf16.mxu0 0
        %1966 = vmatpush1.bf16.msra.mxu0 %v873
        %1967 = vmatprep.subr.bf16.mxu0 0
        %1968 = vmatpush1.bf16.msra.mxu0 0
        %1969 = vmatprep.subr.bf16.mxu0 0
        %1970 = vmatpush1.bf16.msra.mxu0 0
        %1971 = vmatprep.subr.bf16.mxu0 0
        %1972 = vmatpush1.bf16.msra.mxu0 0
        %1973 = vmatprep.subr.bf16.mxu0 0
        %1974 = vmatpush1.bf16.msra.mxu0 0
        %1975 = vmatprep.subr.bf16.mxu0 0
        %1976 = vmatpush1.bf16.msra.mxu0 0
        %1977 = vmatprep.subr.bf16.mxu0 0
        %1978 = vmatpush1.bf16.msra.mxu0 0
        %1979 = vmatprep.subr.bf16.mxu0 0
        %1980 = vmatpush1.bf16.msra.mxu0 0
        %1981 = vmatprep.subr.bf16.mxu0 0
        %1982 = vmatpush1.bf16.msra.mxu0 0
        %1983 = vmatprep.subr.bf16.mxu0 0
        %1984 = vmatpush1.bf16.msra.mxu0 0
        %1985 = vmatprep.subr.bf16.mxu0 0
        %1986 = vmatpush1.bf16.msra.mxu0 0
        %1987 = vmatprep.subr.bf16.mxu0 0
        %1988 = vmatpush1.bf16.msra.mxu0 0
        %1989 = vmatprep.subr.bf16.mxu0 0
        %1990 = vmatpush1.bf16.msra.mxu0 0
        %1991 = vmatprep.mubr.bf16.mxu0 0
        %1992 = vmatmul.mubr.bf16.gmra.mrb[0].mxu0 %v1957
        %v1993 = vpop.f32.mrb[0].mxu0
        %v1994 = vadd.f32 %v762, %v1993
        %v1995 = vpop.f32.mrb[0].mxu0
        %v1996 = vpop.f32.mrb[0].mxu0
        %v1997 = vpop.f32.mrb[0].mxu0
        %1998 = vdwg.mxu0
        %v1999 = vxor.u32 %v1994, 2147483648
        %v2000 = vmul.f32 %v1999, 1.442695
        %v2001 = vpow.pop %v2000
        %v2002 = vadd.f32 %v2001, 1.0
        %v2003 = vrcp.pop %v2002
        %v2004 = vmul.f32 1.0, %v2003
        %v2005 = vtanh.pop %v1994
        %v2006 = vmul.f32 %v2004, %v1862
        %2008 = vrot.lane.b32.xlu0 %v2005, 64
        %v2009 = vpop.permute.xlu0 %2008
        %v2011 = vmul.f32 %v2004, %v2009
        %2013 = vrot.lane.b32.xlu0 %v2011, 32
        %v2014 = vpop.permute.xlu0 %2013
        %v2016 = vadd.f32 %v2006, %v2014
        %v2017 = vtanh.pop %v2016
        %2019 = vrot.lane.b32.xlu0 %v2017, 64
        %v2020 = vpop.permute.xlu0 %2019
        %v2022 = vmul.f32 %v2004, %v2020
        %2024 = vrot.lane.b32.xlu0 %v2022, 32
        %v2025 = vpop.permute.xlu0 %2024
        %2027 = vst.msk [vmem:[%s485 + $0x7] sm:$0x1] %vm595, %v2025
        %s2028 = sand.u32 %s284, 1
        %s2029 = scalar_lea.sflag [#allocation5], %s2028
        %s2030 = sand.u32 %s284, 1
        %s2031 = smul.addr %s2030, 8
        %s2032 = scalar_lea.vmem [#allocation11], %s2031
        %s2033 = sand.u32 %s310, 1
        %s2034 = scalar_lea.sflag [#allocation13], %s2033
        %s2035 = sand.u32 %s310, 1
        %s2036 = scalar_lea.vmem [#allocation12], %s2035
        // Predicated region
        $region81: #{tpu_custom_call.1} parent=63 // pred_check
          %p2037 = pneg %p294
        $region82: #{tpu_custom_call.1} parent=63 // pred_check_branch
          %2039 = sbr.rel (%p2037) target = $region84
        $region83: #{tpu_custom_call.1} parent=63 // pred_region
          %s2041 = ssub.s32 128, 128
          %2042 = vsyncadd %s2029, %s2041
          %s2043 = smul.addr %s35, 128
          %s2044 = scalar_lea.hbm %s11, %s2043
          %s2046 = sshll.u32 %s2032, 4
          %s2047 = int_to_ptr.vmem [resolvable:$true] %s2046
          %2049 = dma.vmem_to_hbm [thread:$0]  %s2047, 128, %s2044, %s2029
        $region84: #{tpu_custom_call.1} parent=63 // pred_fallthru
          _
        // Predicated region
        $region85: #{tpu_custom_call.1} parent=63 // pred_check
          %p2050 = pneg %p320
        $region86: #{tpu_custom_call.1} parent=63 // pred_check_branch
          %2052 = sbr.rel (%p2050) target = $region88
        $region87: #{tpu_custom_call.1} parent=63 // pred_region
          %s2054 = ssub.s32 16, 16
          %2055 = vsyncadd %s2034, %s2054
          %s2056 = smul.addr %s35, 16
          %s2057 = scalar_lea.hbm %s12, %s2056
          %s2059 = sshll.u32 %s2036, 4
          %s2060 = int_to_ptr.vmem [resolvable:$true] %s2059
          %2062 = dma.vmem_to_hbm [thread:$0]  %s2060, 16, %s2057, %s2034
        $region88: #{tpu_custom_call.1} parent=63 // pred_fallthru
          _
      $region64: #{tpu_custom_call.1} parent=5 // pred_fallthru
        _
      %p2063 = scmp.le.s32.totalorder 2, %s30
      // Predicated region
      $region89: #{tpu_custom_call.1} parent=5 // pred_check
        %p2064 = pneg %p2063
      $region90: #{tpu_custom_call.1} parent=5 // pred_check_branch
        %2066 = sbr.rel (%p2064) target = $region92
      $region91: #{tpu_custom_call.1} parent=5 // pred_region
        %s2067 = ssub.s32 %s30, 2
        // Predicated region
        $region93: #{tpu_custom_call.1} parent=91 // pred_check
          %p2068 = pneg %p300
        $region94: #{tpu_custom_call.1} parent=91 // pred_check_branch
          %2070 = sbr.rel (%p2068) target = $region96
        $region95: #{tpu_custom_call.1} parent=91 // pred_region
          %s2071 = sand.u32 %s285, 1
          %s2072 = scalar_lea.sflag [#allocation5], %s2071
          %s2073 = sand.u32 %s285, 1
          %s2074 = smul.addr %s2073, 8
          %s2075 = scalar_lea.vmem [#allocation11], %s2074
          %2076 = dma.done %s2072, 128
        $region96: #{tpu_custom_call.1} parent=91 // pred_fallthru
          _
        // Predicated region
        $region97: #{tpu_custom_call.1} parent=91 // pred_check
          %p2077 = pneg %p326
        $region98: #{tpu_custom_call.1} parent=91 // pred_check_branch
          %2079 = sbr.rel (%p2077) target = $region100
        $region99: #{tpu_custom_call.1} parent=91 // pred_region
          %s2080 = sand.u32 %s311, 1
          %s2081 = scalar_lea.sflag [#allocation13], %s2080
          %s2082 = sand.u32 %s311, 1
          %s2083 = scalar_lea.vmem [#allocation12], %s2082
          %2084 = dma.done %s2081, 16
        $region100: #{tpu_custom_call.1} parent=91 // pred_fallthru
          _
      $region92: #{tpu_custom_call.1} parent=5 // pred_fallthru
        _
    $region6: #{tpu_custom_call.1} parent=1 // loop_footer
      %s34 = sadd.s32 1, %s30
    $region7: #{tpu_custom_call.1} parent=1 // loop_footer_branch
      %29 = sbr.rel target = $region3
    $region8: #{tpu_custom_call.1} parent=1 // loop_exit
      _
    %2085 = vsyncpa [#allocation4], 1
    %s2086 = scalar_lea.sflag [#allocation4], 1
    %2087 = vsyncpa %s2086, 1
    %2088 = vsyncpa [#allocation7], 1
    %2089 = vsyncpa [#allocation10], 1
    %2090 = vsyncpa [#allocation5], 1
    %s2091 = scalar_lea.sflag [#allocation5], 1
    %2092 = vsyncpa %s2091, 1
    %2093 = vsyncpa [#allocation13], 1
    %s2094 = scalar_lea.sflag [#allocation13], 1
    %2095 = vsyncpa %s2094, 1

</llo_original>
